<compile_context>
chip_gen: v7x
topology: tpu7x:2x2x1
jax: 0.10.0
libtpu: 0.0.40
codegen_flags: <defaults>
</compile_context>

<pallas_src>
import jax
import jax.numpy as jnp
from jax.experimental import pallas as pl
from jax.experimental.pallas import tpu as pltpu

BERT_DIM = 768


def _round_up(x, m):
    return ((x + m - 1) // m) * m


def _detect_physical_vmem_bytes():
    """Best-effort physical VMEM size; assume the smallest (v7x, 64 MiB) if unknown."""
    try:
        info = pltpu.get_tpu_info()
        for name in ("vmem_capacity_bytes", "vmem_size_bytes", "vmem_bytes"):
            v = getattr(info, name, None)
            if isinstance(v, int) and v > 0:
                return v
    except Exception:
        pass
    return 64 * 2**20


def _step_vmem_bytes(tb, l_pad, d_pad):
    """Per-grid-step VMEM footprint estimate (blocks + scratch + temporaries)."""
    rows = tb * l_pad
    emb_gather = rows * BERT_DIM * 4        # f32 gather scratch (single buffer)
    emb_bf16 = rows * BERT_DIM * 2          # bf16 cast temporary for the MXU
    w = BERT_DIM * d_pad * 2                # bf16 weights (single-buffered)
    bias = 2 * d_pad * 4
    lens = 2 * tb * 4 * 2
    cap_out = 2 * rows * d_pad * 4          # double-buffered projected output
    pooled_out = 2 * tb * d_pad * 4
    temps = 2 * rows * d_pad * 4            # matmul result + masked product
    return emb_gather + emb_bf16 + w + bias + lens + cap_out + pooled_out + temps


def _pick_batch_tile(B, l_pad, d_pad, target_rows, vmem_budget):
    """Batch-tile size: ~target_rows projection rows per step, VMEM-budgeted."""
    tb = max(1, target_rows // max(l_pad, 1))
    if tb >= B:
        if B >= 16:
            # Keep >= 2 grid steps: lets the "parallel" axis shard across
            # v7x's two TensorCores and keeps prefetch/writeback overlap.
            tb = max(8, ((B // 2) // 8) * 8)
        else:
            tb = B
    else:
        tb = max(8, (tb // 8) * 8)
    # Shrink until the per-step footprint fits this generation's VMEM budget.
    while tb > 8 and _step_vmem_bytes(tb, l_pad, d_pad) > int(0.8 * vmem_budget):
        tb = max(8, ((tb // 2) // 8) * 8)
    return tb


def _encoder_text_kernel(tok_ref, w_ref, b_ref, len_ref, temb_hbm,
                         cap_ref, pooled_ref, emb_buf, gather_sem):
    """Per-batch-tile kernel.

    tok_ref    : (B_pad*L,)     i32   token ids, scalar-prefetched into SMEM
    w_ref      : (768, Dpad)    bf16  linear weight (constant across grid)
    b_ref      : (1, Dpad)      f32   linear bias   (constant across grid)
    len_ref    : (TB, 1, 1)     i32   caption lengths for this batch tile
    temb_hbm   : (VOCAB, 768)   f32   token-embedding table, left in HBM
    cap_ref    : (TB, L, Dpad)  out   projected caption embeddings
    pooled_ref : (TB, Dpad)     out   pooled + l2-normalized features
    emb_buf    : (TB*L, 768)    f32   VMEM scratch for the gathered rows
    gather_sem :                DMA semaphore shared by the row-gather copies
    """
    TB, L, D = cap_ref.shape
    rows = TB * L
    base = pl.program_id(0) * rows

    # --- fused BERT-stub embedding lookup: one row DMA per token -----------
    @pl.loop(0, rows)
    def _issue(r):
        tid = tok_ref[base + r]
        pltpu.make_async_copy(temb_hbm.at[pl.ds(tid, 1)],
                              emb_buf.at[pl.ds(r, 1)],
                              gather_sem).start()

    @pl.loop(0, rows)
    def _drain(r):
        pltpu.make_async_copy(temb_hbm.at[pl.ds(0, 1)],
                              emb_buf.at[pl.ds(r, 1)],
                              gather_sem).wait()

    # --- linear: cap_emb = bert_emb @ W + b (bf16 MXU, f32 accumulation) ---
    emb = emb_buf[...].astype(jnp.bfloat16)                       # (rows, 768)
    cap2 = jnp.dot(emb, w_ref[...], preferred_element_type=jnp.float32)
    cap2 = cap2 + b_ref[...]                                      # (rows, D)
    cap3 = cap2.reshape(TB, L, D)               # layout-preserving: L % 8 == 0
    cap_ref[...] = cap3.astype(cap_ref.dtype)

    # --- length-masked pooling (GPO stand-in).  The mean's 1/n cancels under
    # the l2norm below, so a masked SUM is used instead of a mean.
    lens = len_ref[...]                                           # (TB,1,1) i32
    pos = jax.lax.broadcasted_iota(jnp.int32, (TB, L, 1), 1)      # seq position
    mask = (pos < lens).astype(jnp.float32)                       # (TB, L, 1)
    pooled = jnp.sum(cap3 * mask, axis=1)                         # (TB, D)

    # l2norm(X, dim=-1): X / (sqrt(sum(X^2)) + eps).  Exact divide (TBxD only).
    norm = jnp.sqrt(jnp.sum(pooled * pooled, axis=-1, keepdims=True)) + 1e-8
    pooled_ref[...] = (pooled / norm).astype(pooled_ref.dtype)


def encoder_text_forward(x_tokens, lengths, params, cap_dtype=jnp.float32):
    """Mirror of EncoderText.forward(x, lengths) -> (pooled_features, cap_emb).

    cap_dtype: dtype of the returned cap_emb.  float32 matches the PyTorch
    module; bfloat16 halves the largest output HBM stream (worth it on v5e)
    when downstream tolerates it.
    """
    B, L = x_tokens.shape
    V, H = params["tok_emb"].shape
    assert H == BERT_DIM, "token embedding table must be (vocab, 768)"
    D = params["lin_w"].shape[1]

    # Lane-dense feature dim (next multiple of 128; no over-padding beyond it).
    D_pad = _round_up(D, 128)
    lin_w = params["lin_w"].astype(jnp.bfloat16)
    lin_b = params["lin_b"].astype(jnp.float32)
    if D_pad != D:
        lin_w = jnp.pad(lin_w, ((0, 0), (0, D_pad - D)))
        lin_b = jnp.pad(lin_b, ((0, D_pad - D),))
    lin_b = lin_b.reshape(1, D_pad)

    # Sublane-friendly sequence length (padded positions masked in pooling).
    L_pad = _round_up(L, 8)

    # Per-generation tile / VMEM sizing.
    phys_vmem = _detect_physical_vmem_bytes()
    if phys_vmem > 96 * 2**20:           # v5e / v6e: 128 MiB physical VMEM
        vmem_cap, target_rows = 100 * 2**20, 2048
    else:                                 # v7x (64 MiB) or unknown: be safe
        vmem_cap, target_rows = 48 * 2**20, 1024

    TB = _pick_batch_tile(B, L_pad, D_pad, target_rows, vmem_cap)
    B_pad = _round_up(B, TB)
    rows = TB * L_pad

    tok = x_tokens.astype(jnp.int32)
    lens = lengths.astype(jnp.int32).reshape(B, 1, 1)
    if L_pad != L:
        tok = jnp.pad(tok, ((0, 0), (0, L_pad - L)))       # pad token id 0
    if B_pad != B:
        tok = jnp.pad(tok, ((0, B_pad - B), (0, 0)))
        lens = jnp.pad(lens, ((0, B_pad - B), (0, 0), (0, 0)))
    # Token ids live in SMEM (scalar prefetch): the fused gather reads them
    # one scalar at a time to build per-row DMA descriptors.
    tok_flat = tok.reshape(B_pad * L_pad)

    # The embedding table stays in HBM (memory_space=pl.ANY); rows are gathered
    # on demand.  f32 rows keep each single-row DMA cleanly sublane-aligned.
    tok_emb = params["tok_emb"].astype(jnp.float32)

    footprint = _step_vmem_bytes(TB, L_pad, D_pad)
    vmem_limit = int(min(vmem_cap, max(footprint * 3 // 2, 16 * 2**20)))

    grid = (B_pad // TB,)
    out_shape = (jax.ShapeDtypeStruct((B_pad, L_pad, D_pad), cap_dtype),
                 jax.ShapeDtypeStruct((B_pad, D_pad), jnp.float32))

    def run(const_pipeline_mode):
        def const_spec(shape):
            idx = lambda b, tok_ids: (0,) * len(shape)
            if const_pipeline_mode is None:
                return pl.BlockSpec(shape, idx)
            return pl.BlockSpec(shape, idx, pipeline_mode=const_pipeline_mode)

        grid_spec = pltpu.PrefetchScalarGridSpec(
            num_scalar_prefetch=1,
            grid=grid,
            in_specs=[
                const_spec((BERT_DIM, D_pad)),                           # W
                const_spec((1, D_pad)),                                  # bias
                pl.BlockSpec((TB, 1, 1), lambda b, tok_ids: (b, 0, 0)),  # lens
                pl.BlockSpec(memory_space=pl.ANY),                       # table
            ],
            out_specs=[
                pl.BlockSpec((TB, L_pad, D_pad), lambda b, tok_ids: (b, 0, 0)),
                pl.BlockSpec((TB, D_pad), lambda b, tok_ids: (b, 0)),
            ],
            scratch_shapes=[
                pltpu.VMEM((rows, BERT_DIM), jnp.float32),   # gathered rows
                pltpu.SemaphoreType.DMA,                     # gather semaphore
            ],
        )
        return pl.pallas_call(
            _encoder_text_kernel,
            out_shape=out_shape,
            grid_spec=grid_spec,
            compiler_params=pltpu.CompilerParams(
                dimension_semantics=("parallel",),
                vmem_limit_bytes=vmem_limit,
            ),
        )(tok_flat, lin_w, lin_b, lens, tok_emb)

    try:
        # Constant W / bias blocks with a single VMEM buffer (their index_map
        # never changes, so a second buffer is pure VMEM + warm-up-DMA waste).
        cap_emb, pooled = run(pl.Buffered(1))
    except Exception:
        # Fallback: default double buffering if this jax build rejects
        # single-buffer pipeline_mode for inputs.
        cap_emb, pooled = run(None)

    # De-pad only when padding was applied; aligned (B, L, D) inputs skip this
    # extra HBM copy of the largest output entirely.
    if (B_pad, L_pad, D_pad) != (B, L, D):
        cap_emb = cap_emb[:B, :L, :D]
    if (B_pad, D_pad) != (B, D):
        pooled = pooled[:B, :D]
    return pooled, cap_emb


def _reference(x_tokens, lengths, params):
    """Pure-JAX (f32) reference of the same computation (masked mean + l2norm)."""
    B, L = x_tokens.shape
    bert_emb = params["tok_emb"][x_tokens].astype(jnp.float32)
    cap = jnp.einsum("blh,hd->bld", bert_emb, params["lin_w"]) + params["lin_b"]
    mask = (jnp.arange(L)[None, :] < lengths[:, None]).astype(jnp.float32)
    n = jnp.maximum(mask.sum(-1, keepdims=True), 1.0)
    pooled = jnp.einsum("bl,bld->bd", mask / n, cap)
    norm = jnp.sqrt((pooled ** 2).sum(-1, keepdims=True)) + 1e-8
    return pooled / norm, cap


if __name__ == "__main__":
    # Small, deterministic example shapes consistent with the module:
    #   batch B=2, sequence L=8, bert hidden=768, embed_size D=128 (lane-dense)
    B, L, D, VOCAB = 2, 8, 128, 100

    key = jax.random.PRNGKey(0)
    k_emb, k_w, k_b, k_tok = jax.random.split(key, 4)

    params = {
        "tok_emb": jax.random.normal(k_emb, (VOCAB, BERT_DIM), jnp.float32) * 0.02,
        "lin_w": jax.random.normal(k_w, (BERT_DIM, D), jnp.float32)
        * (1.0 / jnp.sqrt(BERT_DIM)),
        "lin_b": jax.random.normal(k_b, (D,), jnp.float32) * 0.01,
    }

    lengths = jnp.array([8, 5], dtype=jnp.int32)
    tokens = jax.random.randint(k_tok, (B, L), 1, VOCAB, dtype=jnp.int32)
    # zero-pad positions beyond the caption length (token id 0 == [PAD])
    x = jnp.where(jnp.arange(L)[None, :] < lengths[:, None], tokens, 0)

    pooled_features, cap_emb = encoder_text_forward(x, lengths, params)
    jax.block_until_ready((pooled_features, cap_emb))

    ref_pooled, ref_cap = _reference(x, lengths, params)
    # bf16 matmul inputs (f32 accumulation) -> loosen tolerances vs f32 ref.
    # (sum-pooling in-kernel == mean-pooling in the reference after l2norm)
    assert jnp.allclose(cap_emb, ref_cap, rtol=2e-2, atol=2e-3)
    assert jnp.allclose(pooled_features, ref_pooled, rtol=2e-2, atol=2e-3)

    print("KERNEL_OK")
</pallas_src>

<mosaic_0001>
module attributes {stable_mosaic.version = 11 : i64} {
  func.func @_encoder_text_kernel(%arg0: i32, %arg1: memref<16xi32, #tpu.memory_space<smem>>, %arg2: memref<768x128xbf16, #tpu.memory_space<vmem>>, %arg3: memref<1x128xf32, #tpu.memory_space<vmem>>, %arg4: memref<2x1x1xi32, #tpu.memory_space<vmem>>, %arg5: memref<100x768xf32, #tpu.memory_space<any>>, %arg6: memref<2x8x128xf32, #tpu.memory_space<vmem>>, %arg7: memref<2x128xf32, #tpu.memory_space<vmem>>, %arg8: memref<16x768xf32, #tpu.memory_space<vmem>>, %arg9: memref<!tpu.dma_semaphore, #tpu.memory_space<semaphore_mem>>) attributes {dimension_semantics = [#tpu.dimension_semantics<parallel>], iteration_bounds = array<i64: 1>, scalar_prefetch = 1 : i64, scratch_operands = 2 : i64, tpu.core_type = #tpu.core_type<tc>, window_params = [{pipeline_mode = #tpu.pipeline_mode<synchronous>, transform_indices = @transform_0, window_bounds = array<i64: 768, 128>}, {pipeline_mode = #tpu.pipeline_mode<synchronous>, transform_indices = @transform_1, window_bounds = array<i64: 1, 128>}, {transform_indices = @transform_2, window_bounds = array<i64: 2, 1, 1>}, {}, {transform_indices = @transform_4, window_bounds = array<i64: 2, 8, 128>}, {transform_indices = @transform_5, window_bounds = array<i64: 2, 128>}]} {
    %c16_i32 = arith.constant 16 : i32
    %0 = arith.muli %arg0, %c16_i32 : i32
    %c0_i32 = arith.constant 0 : i32
    %c16_i32_0 = arith.constant 16 : i32
    %1 = arith.addi %c0_i32, %c16_i32_0 : i32
    %c1_i32 = arith.constant 1 : i32
    scf.for %arg10 = %c0_i32 to %1 step %c1_i32  : i32 {
      %c1_i32_22 = arith.constant 1 : i32
      %30 = arith.muli %arg10, %c1_i32_22 : i32
      %c0_i32_23 = arith.constant 0 : i32
      %31 = arith.addi %c0_i32_23, %30 : i32
      %32 = arith.addi %0, %31 : i32
      %33 = arith.index_cast %32 : i32 to index
      %34 = memref.load %arg1[%33] : memref<16xi32, #tpu.memory_space<smem>>
      %c0_i32_24 = arith.constant 0 : i32
      %35 = tpu.memref_slice %arg5[%34, %c0_i32_24] : memref<100x768xf32, #tpu.memory_space<any>> -> memref<1x768xf32, #tpu.memory_space<any>>
      %c0_i32_25 = arith.constant 0 : i32
      %36 = tpu.memref_slice %arg8[%31, %c0_i32_25] : memref<16x768xf32, #tpu.memory_space<vmem>> -> memref<1x768xf32, #tpu.memory_space<vmem>>
      tpu.enqueue_dma source(%35 : memref<1x768xf32, #tpu.memory_space<any>>) target(%36 : memref<1x768xf32, #tpu.memory_space<vmem>>) target_semaphore(%arg9 : memref<!tpu.dma_semaphore, #tpu.memory_space<semaphore_mem>>)
    }
    %c16_i32_1 = arith.constant 16 : i32
    %c0_i32_2 = arith.constant 0 : i32
    %c16_i32_3 = arith.constant 16 : i32
    %2 = arith.addi %c0_i32_2, %c16_i32_3 : i32
    %c1_i32_4 = arith.constant 1 : i32
    scf.for %arg10 = %c0_i32_2 to %2 step %c1_i32_4  : i32 {
      %c1_i32_22 = arith.constant 1 : i32
      %30 = arith.muli %arg10, %c1_i32_22 : i32
      %c0_i32_23 = arith.constant 0 : i32
      %31 = arith.addi %c0_i32_23, %30 : i32
      %c0_i32_24 = arith.constant 0 : i32
      %c0_i32_25 = arith.constant 0 : i32
      %32 = tpu.memref_slice %arg5[%c0_i32_24, %c0_i32_25] : memref<100x768xf32, #tpu.memory_space<any>> -> memref<1x768xf32, #tpu.memory_space<any>>
      %c0_i32_26 = arith.constant 0 : i32
      %33 = tpu.memref_slice %arg8[%31, %c0_i32_26] : memref<16x768xf32, #tpu.memory_space<vmem>> -> memref<1x768xf32, #tpu.memory_space<vmem>>
      tpu.wait_dma2 semaphore(%arg9 : memref<!tpu.dma_semaphore, #tpu.memory_space<semaphore_mem>>) src(%32 : memref<1x768xf32, #tpu.memory_space<any>>) dst(%33 : memref<1x768xf32, #tpu.memory_space<vmem>>)
    }
    %c16_i32_5 = arith.constant 16 : i32
    %c0 = arith.constant 0 : index
    %c0_6 = arith.constant 0 : index
    %3 = vector.load %arg8[%c0, %c0_6] : memref<16x768xf32, #tpu.memory_space<vmem>>, vector<16x768xf32>
    %4 = arith.truncf %3 : vector<16x768xf32> to vector<16x768xbf16>
    %c0_7 = arith.constant 0 : index
    %c0_8 = arith.constant 0 : index
    %5 = vector.load %arg2[%c0_7, %c0_8] : memref<768x128xbf16, #tpu.memory_space<vmem>>, vector<768x128xbf16>
    %cst = arith.constant dense<0.000000e+00> : vector<16x128xf32>
    %6 = tpu.matmul %4, %5, %cst {dimension_numbers = #tpu.dot_dimension_numbers<[1], [0], [0], [1], [0, 0, 1, 1], [], []>} : vector<16x768xbf16>, vector<768x128xbf16>, vector<16x128xf32> -> vector<16x128xf32>
    %c0_9 = arith.constant 0 : index
    %c0_10 = arith.constant 0 : index
    %7 = vector.load %arg3[%c0_9, %c0_10] : memref<1x128xf32, #tpu.memory_space<vmem>>, vector<1x128xf32>
    %8 = vector.broadcast %7 : vector<1x128xf32> to vector<16x128xf32>
    %9 = arith.addf %6, %8 : vector<16x128xf32>
    %10 = vector.shape_cast %9 : vector<16x128xf32> to vector<2x8x128xf32>
    %c0_11 = arith.constant 0 : index
    %c0_12 = arith.constant 0 : index
    %c0_13 = arith.constant 0 : index
    %11 = vector.load %arg6[%c0_11, %c0_12, %c0_13] : memref<2x8x128xf32, #tpu.memory_space<vmem>>, vector<2x8x128xf32>
    tpu.vector_store %arg6[%c0_11, %c0_12, %c0_13], %10 {strides = array<i32>} : memref<2x8x128xf32, #tpu.memory_space<vmem>>, vector<2x8x128xf32>,
    %c0_14 = arith.constant 0 : index
    %c0_15 = arith.constant 0 : index
    %c0_16 = arith.constant 0 : index
    %12 = vector.load %arg4[%c0_14, %c0_15, %c0_16] : memref<2x1x1xi32, #tpu.memory_space<vmem>>, vector<2x1x1xi32>
    %13 = tpu.iota {dimensions = array<i32: 1>} : vector<2x8x1xi32>
    %14 = vector.broadcast %12 : vector<2x1x1xi32> to vector<2x8x1xi32>
    %15 = arith.cmpi slt, %13, %14 : vector<2x8x1xi32>
    %16 = arith.extui %15 : vector<2x8x1xi1> to vector<2x8x1xi32>
    %17 = arith.sitofp %16 : vector<2x8x1xi32> to vector<2x8x1xf32>
    %18 = vector.broadcast %17 : vector<2x8x1xf32> to vector<2x8x128xf32>
    %19 = arith.mulf %10, %18 : vector<2x8x128xf32>
    %cst_17 = arith.constant dense<0.000000e+00> : vector<2x128xf32>
    %20 = vector.multi_reduction <add>, %19, %cst_17 [1] : vector<2x8x128xf32> to vector<2x128xf32>
    %21 = arith.mulf %20, %20 : vector<2x128xf32>
    %cst_18 = arith.constant dense<0.000000e+00> : vector<2xf32>
    %22 = vector.multi_reduction <add>, %21, %cst_18 [1] : vector<2x128xf32> to vector<2xf32>
    %23 = vector.shape_cast %22 : vector<2xf32> to vector<2x1xf32>
    %24 = math.sqrt %23 : vector<2x1xf32>
    %cst_19 = arith.constant 9.99999993E-9 : f32
    %25 = vector.broadcast %cst_19 : f32 to vector<2x1xf32>
    %26 = arith.addf %24, %25 : vector<2x1xf32>
    %27 = vector.broadcast %26 : vector<2x1xf32> to vector<2x128xf32>
    %28 = arith.divf %20, %27 : vector<2x128xf32>
    %c0_20 = arith.constant 0 : index
    %c0_21 = arith.constant 0 : index
    %29 = vector.load %arg7[%c0_20, %c0_21] : memref<2x128xf32, #tpu.memory_space<vmem>>, vector<2x128xf32>
    tpu.vector_store %arg7[%c0_20, %c0_21], %28 {strides = array<i32>} : memref<2x128xf32, #tpu.memory_space<vmem>>, vector<2x128xf32>,
    return
  }
  func.func @transform_0(%arg0: i32, %arg1: memref<16xi32, #tpu.memory_space<smem>>) -> (i32, i32) {
    %c0_i32 = arith.constant 0 : i32
    %c0_i32_0 = arith.constant 0 : i32
    %c0_i32_1 = arith.constant 0 : i32
    return %c0_i32, %c0_i32_0 : i32, i32
  }
  func.func @transform_1(%arg0: i32, %arg1: memref<16xi32, #tpu.memory_space<smem>>) -> (i32, i32) {
    %c0_i32 = arith.constant 0 : i32
    %c0_i32_0 = arith.constant 0 : i32
    %c0_i32_1 = arith.constant 0 : i32
    return %c0_i32, %c0_i32_0 : i32, i32
  }
  func.func @transform_2(%arg0: i32, %arg1: memref<16xi32, #tpu.memory_space<smem>>) -> (i32, i32, i32) {
    %c0_i32 = arith.constant 0 : i32
    %c0_i32_0 = arith.constant 0 : i32
    %c0_i32_1 = arith.constant 0 : i32
    return %arg0, %c0_i32, %c0_i32_0 : i32, i32, i32
  }
  func.func @transform_4(%arg0: i32, %arg1: memref<16xi32, #tpu.memory_space<smem>>) -> (i32, i32, i32) {
    %c0_i32 = arith.constant 0 : i32
    %c0_i32_0 = arith.constant 0 : i32
    %c0_i32_1 = arith.constant 0 : i32
    return %arg0, %c0_i32, %c0_i32_0 : i32, i32, i32
  }
  func.func @transform_5(%arg0: i32, %arg1: memref<16xi32, #tpu.memory_space<smem>>) -> (i32, i32) {
    %c0_i32 = arith.constant 0 : i32
    %c0_i32_0 = arith.constant 0 : i32
    return %arg0, %c0_i32 : i32, i32
  }
}

module attributes {stable_mosaic.version = 11 : i64} {
  func.func @_encoder_text_kernel(%arg0: i32, %arg1: memref<16xi32, #tpu.memory_space<smem>>, %arg2: memref<768x128xbf16, #tpu.memory_space<vmem>>, %arg3: memref<1x128xf32, #tpu.memory_space<vmem>>, %arg4: memref<2x1x1xi32, #tpu.memory_space<vmem>>, %arg5: memref<100x768xf32, #tpu.memory_space<any>>, %arg6: memref<2x8x128xf32, #tpu.memory_space<vmem>>, %arg7: memref<2x128xf32, #tpu.memory_space<vmem>>, %arg8: memref<16x768xf32, #tpu.memory_space<vmem>>, %arg9: memref<!tpu.dma_semaphore, #tpu.memory_space<semaphore_mem>>) attributes {dimension_semantics = [#tpu.dimension_semantics<parallel>], iteration_bounds = array<i64: 1>, scalar_prefetch = 1 : i64, scratch_operands = 2 : i64, tpu.core_type = #tpu.core_type<tc>, window_params = [{pipeline_mode = #tpu.pipeline_mode<synchronous>, transform_indices = @transform_0, window_bounds = array<i64: 768, 128>}, {pipeline_mode = #tpu.pipeline_mode<synchronous>, transform_indices = @transform_1, window_bounds = array<i64: 1, 128>}, {transform_indices = @transform_2, window_bounds = array<i64: 2, 1, 1>}, {}, {transform_indices = @transform_4, window_bounds = array<i64: 2, 8, 128>}, {transform_indices = @transform_5, window_bounds = array<i64: 2, 128>}]} {
    %c16_i32 = arith.constant 16 : i32
    %0 = arith.muli %arg0, %c16_i32 : i32
    %c0_i32 = arith.constant 0 : i32
    %c16_i32_0 = arith.constant 16 : i32
    %1 = arith.addi %c0_i32, %c16_i32_0 : i32
    %c1_i32 = arith.constant 1 : i32
    scf.for %arg10 = %c0_i32 to %1 step %c1_i32  : i32 {
      %c1_i32_22 = arith.constant 1 : i32
      %30 = arith.muli %arg10, %c1_i32_22 : i32
      %c0_i32_23 = arith.constant 0 : i32
      %31 = arith.addi %c0_i32_23, %30 : i32
      %32 = arith.addi %0, %31 : i32
      %33 = arith.index_cast %32 : i32 to index
      %34 = memref.load %arg1[%33] : memref<16xi32, #tpu.memory_space<smem>>
      %c0_i32_24 = arith.constant 0 : i32
      %35 = tpu.memref_slice %arg5[%34, %c0_i32_24] : memref<100x768xf32, #tpu.memory_space<any>> -> memref<1x768xf32, #tpu.memory_space<any>>
      %c0_i32_25 = arith.constant 0 : i32
      %36 = tpu.memref_slice %arg8[%31, %c0_i32_25] : memref<16x768xf32, #tpu.memory_space<vmem>> -> memref<1x768xf32, #tpu.memory_space<vmem>>
      tpu.enqueue_dma source(%35 : memref<1x768xf32, #tpu.memory_space<any>>) target(%36 : memref<1x768xf32, #tpu.memory_space<vmem>>) target_semaphore(%arg9 : memref<!tpu.dma_semaphore, #tpu.memory_space<semaphore_mem>>)
    }
    %c16_i32_1 = arith.constant 16 : i32
    %c0_i32_2 = arith.constant 0 : i32
    %c16_i32_3 = arith.constant 16 : i32
    %2 = arith.addi %c0_i32_2, %c16_i32_3 : i32
    %c1_i32_4 = arith.constant 1 : i32
    scf.for %arg10 = %c0_i32_2 to %2 step %c1_i32_4  : i32 {
      %c1_i32_22 = arith.constant 1 : i32
      %30 = arith.muli %arg10, %c1_i32_22 : i32
      %c0_i32_23 = arith.constant 0 : i32
      %31 = arith.addi %c0_i32_23, %30 : i32
      %c0_i32_24 = arith.constant 0 : i32
      %c0_i32_25 = arith.constant 0 : i32
      %32 = tpu.memref_slice %arg5[%c0_i32_24, %c0_i32_25] : memref<100x768xf32, #tpu.memory_space<any>> -> memref<1x768xf32, #tpu.memory_space<any>>
      %c0_i32_26 = arith.constant 0 : i32
      %33 = tpu.memref_slice %arg8[%31, %c0_i32_26] : memref<16x768xf32, #tpu.memory_space<vmem>> -> memref<1x768xf32, #tpu.memory_space<vmem>>
      tpu.wait_dma2 semaphore(%arg9 : memref<!tpu.dma_semaphore, #tpu.memory_space<semaphore_mem>>) src(%32 : memref<1x768xf32, #tpu.memory_space<any>>) dst(%33 : memref<1x768xf32, #tpu.memory_space<vmem>>)
    }
    %c16_i32_5 = arith.constant 16 : i32
    %c0 = arith.constant 0 : index
    %c0_6 = arith.constant 0 : index
    %3 = vector.load %arg8[%c0, %c0_6] : memref<16x768xf32, #tpu.memory_space<vmem>>, vector<16x768xf32>
    %4 = arith.truncf %3 : vector<16x768xf32> to vector<16x768xbf16>
    %c0_7 = arith.constant 0 : index
    %c0_8 = arith.constant 0 : index
    %5 = vector.load %arg2[%c0_7, %c0_8] : memref<768x128xbf16, #tpu.memory_space<vmem>>, vector<768x128xbf16>
    %cst = arith.constant dense<0.000000e+00> : vector<16x128xf32>
    %6 = tpu.matmul %4, %5, %cst {dimension_numbers = #tpu.dot_dimension_numbers<[1], [0], [0], [1], [0, 0, 1, 1], [], []>} : vector<16x768xbf16>, vector<768x128xbf16>, vector<16x128xf32> -> vector<16x128xf32>
    %c0_9 = arith.constant 0 : index
    %c0_10 = arith.constant 0 : index
    %7 = vector.load %arg3[%c0_9, %c0_10] : memref<1x128xf32, #tpu.memory_space<vmem>>, vector<1x128xf32>
    %8 = vector.broadcast %7 : vector<1x128xf32> to vector<16x128xf32>
    %9 = arith.addf %6, %8 : vector<16x128xf32>
    %10 = vector.shape_cast %9 : vector<16x128xf32> to vector<2x8x128xf32>
    %c0_11 = arith.constant 0 : index
    %c0_12 = arith.constant 0 : index
    %c0_13 = arith.constant 0 : index
    %11 = vector.load %arg6[%c0_11, %c0_12, %c0_13] : memref<2x8x128xf32, #tpu.memory_space<vmem>>, vector<2x8x128xf32>
    tpu.vector_store %arg6[%c0_11, %c0_12, %c0_13], %10 {strides = array<i32>} : memref<2x8x128xf32, #tpu.memory_space<vmem>>, vector<2x8x128xf32>,
    %c0_14 = arith.constant 0 : index
    %c0_15 = arith.constant 0 : index
    %c0_16 = arith.constant 0 : index
    %12 = vector.load %arg4[%c0_14, %c0_15, %c0_16] : memref<2x1x1xi32, #tpu.memory_space<vmem>>, vector<2x1x1xi32>
    %13 = tpu.iota {dimensions = array<i32: 1>} : vector<2x8x1xi32>
    %14 = vector.broadcast %12 : vector<2x1x1xi32> to vector<2x8x1xi32>
    %15 = arith.cmpi slt, %13, %14 : vector<2x8x1xi32>
    %16 = arith.extui %15 : vector<2x8x1xi1> to vector<2x8x1xi32>
    %17 = arith.sitofp %16 : vector<2x8x1xi32> to vector<2x8x1xf32>
    %18 = vector.broadcast %17 : vector<2x8x1xf32> to vector<2x8x128xf32>
    %19 = arith.mulf %10, %18 : vector<2x8x128xf32>
    %cst_17 = arith.constant dense<0.000000e+00> : vector<2x128xf32>
    %20 = vector.multi_reduction <add>, %19, %cst_17 [1] : vector<2x8x128xf32> to vector<2x128xf32>
    %21 = arith.mulf %20, %20 : vector<2x128xf32>
    %cst_18 = arith.constant dense<0.000000e+00> : vector<2xf32>
    %22 = vector.multi_reduction <add>, %21, %cst_18 [1] : vector<2x128xf32> to vector<2xf32>
    %23 = vector.shape_cast %22 : vector<2xf32> to vector<2x1xf32>
    %24 = math.sqrt %23 : vector<2x1xf32>
    %cst_19 = arith.constant 9.99999993E-9 : f32
    %25 = vector.broadcast %cst_19 : f32 to vector<2x1xf32>
    %26 = arith.addf %24, %25 : vector<2x1xf32>
    %27 = vector.broadcast %26 : vector<2x1xf32> to vector<2x128xf32>
    %28 = arith.divf %20, %27 : vector<2x128xf32>
    %c0_20 = arith.constant 0 : index
    %c0_21 = arith.constant 0 : index
    %29 = vector.load %arg7[%c0_20, %c0_21] : memref<2x128xf32, #tpu.memory_space<vmem>>, vector<2x128xf32>
    tpu.vector_store %arg7[%c0_20, %c0_21], %28 {strides = array<i32>} : memref<2x128xf32, #tpu.memory_space<vmem>>, vector<2x128xf32>,
    return
  }
  func.func @transform_0(%arg0: i32, %arg1: memref<16xi32, #tpu.memory_space<smem>>) -> (i32, i32) {
    %c0_i32 = arith.constant 0 : i32
    %c0_i32_0 = arith.constant 0 : i32
    %c0_i32_1 = arith.constant 0 : i32
    return %c0_i32, %c0_i32_0 : i32, i32
  }
  func.func @transform_1(%arg0: i32, %arg1: memref<16xi32, #tpu.memory_space<smem>>) -> (i32, i32) {
    %c0_i32 = arith.constant 0 : i32
    %c0_i32_0 = arith.constant 0 : i32
    %c0_i32_1 = arith.constant 0 : i32
    return %c0_i32, %c0_i32_0 : i32, i32
  }
  func.func @transform_2(%arg0: i32, %arg1: memref<16xi32, #tpu.memory_space<smem>>) -> (i32, i32, i32) {
    %c0_i32 = arith.constant 0 : i32
    %c0_i32_0 = arith.constant 0 : i32
    %c0_i32_1 = arith.constant 0 : i32
    return %arg0, %c0_i32, %c0_i32_0 : i32, i32, i32
  }
  func.func @transform_4(%arg0: i32, %arg1: memref<16xi32, #tpu.memory_space<smem>>) -> (i32, i32, i32) {
    %c0_i32 = arith.constant 0 : i32
    %c0_i32_0 = arith.constant 0 : i32
    %c0_i32_1 = arith.constant 0 : i32
    return %arg0, %c0_i32, %c0_i32_0 : i32, i32, i32
  }
  func.func @transform_5(%arg0: i32, %arg1: memref<16xi32, #tpu.memory_space<smem>>) -> (i32, i32) {
    %c0_i32 = arith.constant 0 : i32
    %c0_i32_0 = arith.constant 0 : i32
    return %arg0, %c0_i32 : i32, i32
  }
}

</mosaic_0001>

<llo_original>
// kernel: tpu_custom_call.1
$region0: #{tpu_custom_call.1}
  #allocation0 [shape = 'u32[]', space=smem, size = 0x4, offset = 0x4, fixed_abs, tag = 'smem constant byte address 0x4 - core index']
  #allocation1 [shape = 'u32[144,128]{1,0:T(1,128)}', space=vmem, size = 0x12000, scoped, tag = 'internal scratch']
  #allocation2 [shape = 'f32[16,768]{1,0:T(8,128)}', space=vmem, size = 0xc000, scoped, tag = 'scratch operand']
  #allocation3 [shape = 's32[1]{0}', space=sflag, size = 0x4, scoped, tag = 'scratch operand']
  #allocation4 [shape = 's32[1]{0}', space=sflag, size = 0x4, scoped, tag = 'scoped memory for tpu_custom_call.1']
  #allocation5 [shape = 'u8[512]{0}', space=smem, size = 0x200, scoped, tag = 'prefetched SMEM operand 0']
  #allocation12 [shape = 's32[]', space=sflag, size = 0x4, offset = 0, fixed_abs, tag = 'sflag constant byte address 0x0 - dummy sync flag']
  %s0 = inlined_call_operand.vmem [shape: s32[16], index: 0, kind: input, shape index: {}]
  %s1 = inlined_call_operand.hbm [shape: bf16[768,128], index: 1, kind: input, shape index: {}]
  %s2 = inlined_call_operand.vmem [shape: f32[1,128], index: 2, kind: input, shape index: {}]
  %s3 = inlined_call_operand.vmem [shape: s32[2,1,1], index: 3, kind: input, shape index: {}]
  %s4 = inlined_call_operand.hbm [shape: f32[100,768], index: 4, kind: input, shape index: {}]
  %s5 = inlined_call_operand.hbm [shape: f32[2,8,128], index: 5, kind: output, shape index: {0}]
  %s6 = inlined_call_operand.hbm [shape: f32[2,128], index: 6, kind: output, shape index: {1}]
  %7 = xla_tuple %s5, %s6
  %s8 = sld [smem:[#allocation0]]
  $region48: #{tpu_custom_call.1} parent=0
    _
  %s10 = ssub.s32 1, %s8
  %s11 = scalar_select 0, %s10, %s8
  %s12 = sshll.u32 %s0, 4
  %s13 = int_to_ptr.vmem [resolvable:$true] %s12
  %15 = dma.vmem_to_smem %s13, 16, [#allocation5], [#allocation4]
  %16 = dma.done [#allocation4], 16
  %17 = sfence
  $region1: #{tpu_custom_call.1} parent=0
    #allocation6 [shape = 'u8[196608]{0}', space=vmem, size = 0x30000, scoped, tag = 'input window, operand 1, single buffered']
    #allocation7 [shape = 's32[1]{0}', space=sflag, size = 0x4, scoped, tag = 'scoped memory for tpu_custom_call.1']
    #allocation8 [shape = 's32[1]{0}', space=sflag, size = 0x4, scoped, tag = 'scoped memory for tpu_custom_call.1']
    #allocation9 [shape = 'u8[8192]{0}', space=vmem, size = 0x2000, scoped, tag = 'output window, operand 0, single buffered']
    #allocation10 [shape = 'u8[1024]{0}', space=vmem, size = 0x400, scoped, tag = 'output window, operand 1, single buffered']
    #allocation11 [shape = 's32[1]{0}', space=sflag, size = 0x4, scoped, tag = 'scoped memory for tpu_custom_call.1']
    %18 = vsyncpa [#allocation7], 0
    %19 = vsyncpa [#allocation8], 0
    %20 = vsyncpa [#allocation11], 0
    // Predicated region
    $region2: #{tpu_custom_call.1} parent=1 // pred_check
      _
    $region3: #{tpu_custom_call.1} parent=1 // pred_check_branch
      %22 = sbr.rel (0) target = $region5
    $region4: #{tpu_custom_call.1} parent=1 // pred_region
      %s24 = ssub.s32 6144, 6144
      %25 = vsyncadd [#allocation7], %s24
      %s26 = sshll.u32 [#allocation6], 4
      %s27 = int_to_ptr.vmem [resolvable:$true] %s26
      %32 = dma.hbm_to_vmem [thread:$0]  %s1, 6144, %s27, [#allocation7], 64, 64, 4
    $region5: #{tpu_custom_call.1} parent=1 // pred_fallthru
      _
    // Predicated region
    $region6: #{tpu_custom_call.1} parent=1 // pred_check
      _
    $region7: #{tpu_custom_call.1} parent=1 // pred_check_branch
      %34 = sbr.rel (0) target = $region9
    $region8: #{tpu_custom_call.1} parent=1 // pred_region
      _
    $region9: #{tpu_custom_call.1} parent=1 // pred_fallthru
      _
    // Predicated region
    $region10: #{tpu_custom_call.1} parent=1 // pred_check
      _
    $region11: #{tpu_custom_call.1} parent=1 // pred_check_branch
      %36 = sbr.rel (0) target = $region13
    $region12: #{tpu_custom_call.1} parent=1 // pred_region
      _
    $region13: #{tpu_custom_call.1} parent=1 // pred_fallthru
      _
    // Predicated region
    $region14: #{tpu_custom_call.1} parent=1 // pred_check
      _
    $region15: #{tpu_custom_call.1} parent=1 // pred_check_branch
      %38 = sbr.rel (0) target = $region17
    $region16: #{tpu_custom_call.1} parent=1 // pred_region
      %39 = dma.done [#allocation7], 6144
    $region17: #{tpu_custom_call.1} parent=1 // pred_fallthru
      _
    %s41 = smul.u32 0, 16
    loop: start=0, step=1, limit=16
    $region18: #{tpu_custom_call.1} parent=1 // loop_pre_header
      _
    $region19: #{tpu_custom_call.1} parent=1 // loop_header
      %s43 = sphi 0, %s47
      %p44 = scmp.ge.s32.totalorder %s43, 16
    $region20: #{tpu_custom_call.1} parent=1 // loop_header_branch
      %46 = sbr.rel (%p44) target = $region24
    $region21: #{tpu_custom_call.1} parent=1 // loop_body
      %s48 = sadd.s32 %s41, %s43
      %s49 = sld [smem:[#allocation5 + %s48]]
      %s50 = sshrl.u32 %s49, 3
      %s51 = sand.u32 %s49, 7
      %s52 = smul.u32 %s50, 48
      %s53 = sadd.s32 %s51, %s52
      %s54 = smul.addr %s53, 16
      %s55 = scalar_lea.hbm %s4, %s54
      %s56 = sshrl.u32 %s43, 3
      %s57 = sand.u32 %s43, 7
      %s58 = smul.u32 %s56, 48
      %s59 = sadd.s32 %s57, %s58
      %s60 = scalar_lea.vmem [#allocation2], %s59
      %s62 = sshll.u32 %s60, 4
      %s63 = int_to_ptr.vmem [resolvable:$true] %s62
      %65 = dma.hbm_to_vmem [thread:$0]  %s55, 96, %s63, [#allocation3], 128, 128, 1
    $region22: #{tpu_custom_call.1} parent=1 // loop_footer
      %s47 = sadd.s32 1, %s43
    $region23: #{tpu_custom_call.1} parent=1 // loop_footer_branch
      %42 = sbr.rel target = $region19
    $region24: #{tpu_custom_call.1} parent=1 // loop_exit
      _
    loop: start=0, step=1, limit=16
    $region25: #{tpu_custom_call.1} parent=1 // loop_pre_header
      _
    $region26: #{tpu_custom_call.1} parent=1 // loop_header
      %s67 = sphi 0, %s71
      %p68 = scmp.ge.s32.totalorder %s67, 16
    $region27: #{tpu_custom_call.1} parent=1 // loop_header_branch
      %70 = sbr.rel (%p68) target = $region31
    $region28: #{tpu_custom_call.1} parent=1 // loop_body
      %s72 = smul.u32 1, 6
      %s73 = sshll.u32 %s72, 4
      %74 = dma.done [#allocation3], %s73
    $region29: #{tpu_custom_call.1} parent=1 // loop_footer
      %s71 = sadd.s32 1, %s67
    $region30: #{tpu_custom_call.1} parent=1 // loop_footer_branch
      %66 = sbr.rel target = $region26
    $region31: #{tpu_custom_call.1} parent=1 // loop_exit
      _
    %v75 = vld [vmem:[#allocation2] sm:$0xff]
    %v76 = vld [vmem:[#allocation2 + $0x8] sm:$0xff]
    %v77 = vld [vmem:[#allocation2 + $0x10] sm:$0xff]
    %v78 = vld [vmem:[#allocation2 + $0x18] sm:$0xff]
    %v79 = vld [vmem:[#allocation2 + $0x20] sm:$0xff]
    %v80 = vld [vmem:[#allocation2 + $0x28] sm:$0xff]
    %v81 = vld [vmem:[#allocation2 + $0x30] sm:$0xff]
    %v82 = vld [vmem:[#allocation2 + $0x38] sm:$0xff]
    %v83 = vld [vmem:[#allocation2 + $0x40] sm:$0xff]
    %v84 = vld [vmem:[#allocation2 + $0x48] sm:$0xff]
    %v85 = vld [vmem:[#allocation2 + $0x50] sm:$0xff]
    %v86 = vld [vmem:[#allocation2 + $0x58] sm:$0xff]
    %v87 = vpack.c.bf16 %v81, %v75
    %v88 = vpack.c.bf16 %v82, %v76
    %v89 = vpack.c.bf16 %v83, %v77
    %v90 = vpack.c.bf16 %v84, %v78
    %v91 = vpack.c.bf16 %v85, %v79
    %v92 = vpack.c.bf16 %v86, %v80
    %v93 = vld [vmem:[#allocation6] sm:$0xf]
    %v94 = vld [vmem:[#allocation6 + $0x4] sm:$0xf]
    %v95 = vld [vmem:[#allocation6 + $0x8] sm:$0xf]
    %v96 = vld [vmem:[#allocation6 + $0xc] sm:$0xf]
    %v97 = vld [vmem:[#allocation6 + $0x10] sm:$0xf]
    %v98 = vld [vmem:[#allocation6 + $0x14] sm:$0xf]
    %v99 = vld [vmem:[#allocation6 + $0x18] sm:$0xf]
    %v100 = vld [vmem:[#allocation6 + $0x1c] sm:$0xf]
    %v101 = vld [vmem:[#allocation6 + $0x20] sm:$0xf]
    %v102 = vld [vmem:[#allocation6 + $0x24] sm:$0xf]
    %v103 = vld [vmem:[#allocation6 + $0x28] sm:$0xf]
    %v104 = vld [vmem:[#allocation6 + $0x2c] sm:$0xf]
    %v105 = vld [vmem:[#allocation6 + $0x30] sm:$0xf]
    %v106 = vld [vmem:[#allocation6 + $0x34] sm:$0xf]
    %v107 = vld [vmem:[#allocation6 + $0x38] sm:$0xf]
    %v108 = vld [vmem:[#allocation6 + $0x3c] sm:$0xf]
    %v109 = vld [vmem:[#allocation6 + $0x40] sm:$0xf]
    %v110 = vld [vmem:[#allocation6 + $0x44] sm:$0xf]
    %v111 = vld [vmem:[#allocation6 + $0x48] sm:$0xf]
    %v112 = vld [vmem:[#allocation6 + $0x4c] sm:$0xf]
    %v113 = vld [vmem:[#allocation6 + $0x50] sm:$0xf]
    %v114 = vld [vmem:[#allocation6 + $0x54] sm:$0xf]
    %v115 = vld [vmem:[#allocation6 + $0x58] sm:$0xf]
    %v116 = vld [vmem:[#allocation6 + $0x5c] sm:$0xf]
    %v117 = vld [vmem:[#allocation6 + $0x60] sm:$0xf]
    %v118 = vld [vmem:[#allocation6 + $0x64] sm:$0xf]
    %v119 = vld [vmem:[#allocation6 + $0x68] sm:$0xf]
    %v120 = vld [vmem:[#allocation6 + $0x6c] sm:$0xf]
    %v121 = vld [vmem:[#allocation6 + $0x70] sm:$0xf]
    %v122 = vld [vmem:[#allocation6 + $0x74] sm:$0xf]
    %v123 = vld [vmem:[#allocation6 + $0x78] sm:$0xf]
    %v124 = vld [vmem:[#allocation6 + $0x7c] sm:$0xf]
    %v125 = vld [vmem:[#allocation6 + $0x80] sm:$0xf]
    %v126 = vld [vmem:[#allocation6 + $0x84] sm:$0xf]
    %v127 = vld [vmem:[#allocation6 + $0x88] sm:$0xf]
    %v128 = vld [vmem:[#allocation6 + $0x8c] sm:$0xf]
    %v129 = vld [vmem:[#allocation6 + $0x90] sm:$0xf]
    %v130 = vld [vmem:[#allocation6 + $0x94] sm:$0xf]
    %v131 = vld [vmem:[#allocation6 + $0x98] sm:$0xf]
    %v132 = vld [vmem:[#allocation6 + $0x9c] sm:$0xf]
    %v133 = vld [vmem:[#allocation6 + $0xa0] sm:$0xf]
    %v134 = vld [vmem:[#allocation6 + $0xa4] sm:$0xf]
    %v135 = vld [vmem:[#allocation6 + $0xa8] sm:$0xf]
    %v136 = vld [vmem:[#allocation6 + $0xac] sm:$0xf]
    %v137 = vld [vmem:[#allocation6 + $0xb0] sm:$0xf]
    %v138 = vld [vmem:[#allocation6 + $0xb4] sm:$0xf]
    %v139 = vld [vmem:[#allocation6 + $0xb8] sm:$0xf]
    %v140 = vld [vmem:[#allocation6 + $0xbc] sm:$0xf]
    %v141 = vld [vmem:[#allocation6 + $0xc0] sm:$0xf]
    %v142 = vld [vmem:[#allocation6 + $0xc4] sm:$0xf]
    %v143 = vld [vmem:[#allocation6 + $0xc8] sm:$0xf]
    %v144 = vld [vmem:[#allocation6 + $0xcc] sm:$0xf]
    %v145 = vld [vmem:[#allocation6 + $0xd0] sm:$0xf]
    %v146 = vld [vmem:[#allocation6 + $0xd4] sm:$0xf]
    %v147 = vld [vmem:[#allocation6 + $0xd8] sm:$0xf]
    %v148 = vld [vmem:[#allocation6 + $0xdc] sm:$0xf]
    %v149 = vld [vmem:[#allocation6 + $0xe0] sm:$0xf]
    %v150 = vld [vmem:[#allocation6 + $0xe4] sm:$0xf]
    %v151 = vld [vmem:[#allocation6 + $0xe8] sm:$0xf]
    %v152 = vld [vmem:[#allocation6 + $0xec] sm:$0xf]
    %v153 = vld [vmem:[#allocation6 + $0xf0] sm:$0xf]
    %v154 = vld [vmem:[#allocation6 + $0xf4] sm:$0xf]
    %v155 = vld [vmem:[#allocation6 + $0xf8] sm:$0xf]
    %v156 = vld [vmem:[#allocation6 + $0xfc] sm:$0xf]
    %v157 = vld [vmem:[#allocation6 + $0x100] sm:$0xf]
    %v158 = vld [vmem:[#allocation6 + $0x104] sm:$0xf]
    %v159 = vld [vmem:[#allocation6 + $0x108] sm:$0xf]
    %v160 = vld [vmem:[#allocation6 + $0x10c] sm:$0xf]
    %v161 = vld [vmem:[#allocation6 + $0x110] sm:$0xf]
    %v162 = vld [vmem:[#allocation6 + $0x114] sm:$0xf]
    %v163 = vld [vmem:[#allocation6 + $0x118] sm:$0xf]
    %v164 = vld [vmem:[#allocation6 + $0x11c] sm:$0xf]
    %v165 = vld [vmem:[#allocation6 + $0x120] sm:$0xf]
    %v166 = vld [vmem:[#allocation6 + $0x124] sm:$0xf]
    %v167 = vld [vmem:[#allocation6 + $0x128] sm:$0xf]
    %v168 = vld [vmem:[#allocation6 + $0x12c] sm:$0xf]
    %v169 = vld [vmem:[#allocation6 + $0x130] sm:$0xf]
    %v170 = vld [vmem:[#allocation6 + $0x134] sm:$0xf]
    %v171 = vld [vmem:[#allocation6 + $0x138] sm:$0xf]
    %v172 = vld [vmem:[#allocation6 + $0x13c] sm:$0xf]
    %v173 = vld [vmem:[#allocation6 + $0x140] sm:$0xf]
    %v174 = vld [vmem:[#allocation6 + $0x144] sm:$0xf]
    %v175 = vld [vmem:[#allocation6 + $0x148] sm:$0xf]
    %v176 = vld [vmem:[#allocation6 + $0x14c] sm:$0xf]
    %v177 = vld [vmem:[#allocation6 + $0x150] sm:$0xf]
    %v178 = vld [vmem:[#allocation6 + $0x154] sm:$0xf]
    %v179 = vld [vmem:[#allocation6 + $0x158] sm:$0xf]
    %v180 = vld [vmem:[#allocation6 + $0x15c] sm:$0xf]
    %v181 = vld [vmem:[#allocation6 + $0x160] sm:$0xf]
    %v182 = vld [vmem:[#allocation6 + $0x164] sm:$0xf]
    %v183 = vld [vmem:[#allocation6 + $0x168] sm:$0xf]
    %v184 = vld [vmem:[#allocation6 + $0x16c] sm:$0xf]
    %v185 = vld [vmem:[#allocation6 + $0x170] sm:$0xf]
    %v186 = vld [vmem:[#allocation6 + $0x174] sm:$0xf]
    %v187 = vld [vmem:[#allocation6 + $0x178] sm:$0xf]
    %v188 = vld [vmem:[#allocation6 + $0x17c] sm:$0xf]
    %v189 = vld [vmem:[%s2] sm:$0x1]
    %v191 = vlaneseq
    %v192 = vshrl.u32 %v191, 7
    %v193 = vsub.s32 0, %v192
    %v194 = vrot.slane %v189, %v193
    %v292 = vunpack.c.l.b16 %v93
    %v293 = vunpack.c.l.b16 %v94
    %v294 = vunpack.c.l.b16 %v95
    %v295 = vunpack.c.l.b16 %v96
    %v296 = vunpack.c.l.b16 %v97
    %v297 = vunpack.c.l.b16 %v98
    %v298 = vunpack.c.l.b16 %v99
    %v299 = vunpack.c.l.b16 %v100
    %v300 = vunpack.c.l.b16 %v101
    %v301 = vunpack.c.l.b16 %v102
    %v302 = vunpack.c.l.b16 %v103
    %v303 = vunpack.c.l.b16 %v104
    %v304 = vunpack.c.l.b16 %v105
    %v305 = vunpack.c.l.b16 %v106
    %v306 = vunpack.c.l.b16 %v107
    %v307 = vunpack.c.l.b16 %v108
    %v308 = vunpack.c.l.b16 %v109
    %v309 = vunpack.c.l.b16 %v110
    %v310 = vunpack.c.l.b16 %v111
    %v311 = vunpack.c.l.b16 %v112
    %v312 = vunpack.c.l.b16 %v113
    %v313 = vunpack.c.l.b16 %v114
    %v314 = vunpack.c.l.b16 %v115
    %v315 = vunpack.c.l.b16 %v116
    %v316 = vunpack.c.l.b16 %v117
    %v317 = vunpack.c.l.b16 %v118
    %v318 = vunpack.c.l.b16 %v119
    %v319 = vunpack.c.l.b16 %v120
    %v320 = vunpack.c.l.b16 %v121
    %v321 = vunpack.c.l.b16 %v122
    %v322 = vunpack.c.l.b16 %v123
    %v323 = vunpack.c.l.b16 %v124
    %v324 = vunpack.c.l.b16 %v125
    %v325 = vunpack.c.l.b16 %v126
    %v326 = vunpack.c.l.b16 %v127
    %v327 = vunpack.c.l.b16 %v128
    %v328 = vunpack.c.l.b16 %v129
    %v329 = vunpack.c.l.b16 %v130
    %v330 = vunpack.c.l.b16 %v131
    %v331 = vunpack.c.l.b16 %v132
    %v332 = vunpack.c.l.b16 %v133
    %v333 = vunpack.c.l.b16 %v134
    %v334 = vunpack.c.l.b16 %v135
    %v335 = vunpack.c.l.b16 %v136
    %v336 = vunpack.c.l.b16 %v137
    %v337 = vunpack.c.l.b16 %v138
    %v338 = vunpack.c.l.b16 %v139
    %v339 = vunpack.c.l.b16 %v140
    %v340 = vunpack.c.l.b16 %v141
    %v341 = vunpack.c.l.b16 %v142
    %v342 = vunpack.c.l.b16 %v143
    %v343 = vunpack.c.l.b16 %v144
    %v344 = vunpack.c.l.b16 %v145
    %v345 = vunpack.c.l.b16 %v146
    %v346 = vunpack.c.l.b16 %v147
    %v347 = vunpack.c.l.b16 %v148
    %v348 = vunpack.c.l.b16 %v149
    %v349 = vunpack.c.l.b16 %v150
    %v350 = vunpack.c.l.b16 %v151
    %v351 = vunpack.c.l.b16 %v152
    %v352 = vunpack.c.l.b16 %v153
    %v353 = vunpack.c.l.b16 %v154
    %v354 = vunpack.c.l.b16 %v155
    %v355 = vunpack.c.l.b16 %v156
    %v356 = vunpack.c.l.b16 %v157
    %v357 = vunpack.c.l.b16 %v158
    %v358 = vunpack.c.l.b16 %v159
    %v359 = vunpack.c.l.b16 %v160
    %v360 = vunpack.c.l.b16 %v161
    %v361 = vunpack.c.l.b16 %v162
    %v362 = vunpack.c.l.b16 %v163
    %v363 = vunpack.c.l.b16 %v164
    %v364 = vunpack.c.l.b16 %v165
    %v365 = vunpack.c.l.b16 %v166
    %v366 = vunpack.c.l.b16 %v167
    %v367 = vunpack.c.l.b16 %v168
    %v368 = vunpack.c.l.b16 %v169
    %v369 = vunpack.c.l.b16 %v170
    %v370 = vunpack.c.l.b16 %v171
    %v371 = vunpack.c.l.b16 %v172
    %v372 = vunpack.c.l.b16 %v173
    %v373 = vunpack.c.l.b16 %v174
    %v374 = vunpack.c.l.b16 %v175
    %v375 = vunpack.c.l.b16 %v176
    %v376 = vunpack.c.l.b16 %v177
    %v377 = vunpack.c.l.b16 %v178
    %v378 = vunpack.c.l.b16 %v179
    %v379 = vunpack.c.l.b16 %v180
    %v380 = vunpack.c.l.b16 %v181
    %v381 = vunpack.c.l.b16 %v182
    %v382 = vunpack.c.l.b16 %v183
    %v383 = vunpack.c.l.b16 %v184
    %v384 = vunpack.c.l.b16 %v185
    %v385 = vunpack.c.l.b16 %v186
    %v386 = vunpack.c.l.b16 %v187
    %v387 = vunpack.c.l.b16 %v188
    %v388 = vpack.c.b16 %v293, %v292
    %v389 = vpack.c.b16 %v295, %v294
    %v390 = vpack.c.b16 %v297, %v296
    %v391 = vpack.c.b16 %v299, %v298
    %v392 = vpack.c.b16 %v301, %v300
    %v393 = vpack.c.b16 %v303, %v302
    %v394 = vpack.c.b16 %v305, %v304
    %v395 = vpack.c.b16 %v307, %v306
    %v396 = vpack.c.b16 %v309, %v308
    %v397 = vpack.c.b16 %v311, %v310
    %v398 = vpack.c.b16 %v313, %v312
    %v399 = vpack.c.b16 %v315, %v314
    %v400 = vpack.c.b16 %v317, %v316
    %v401 = vpack.c.b16 %v319, %v318
    %v402 = vpack.c.b16 %v321, %v320
    %v403 = vpack.c.b16 %v323, %v322
    %v404 = vpack.c.b16 %v325, %v324
    %v405 = vpack.c.b16 %v327, %v326
    %v406 = vpack.c.b16 %v329, %v328
    %v407 = vpack.c.b16 %v331, %v330
    %v408 = vpack.c.b16 %v333, %v332
    %v409 = vpack.c.b16 %v335, %v334
    %v410 = vpack.c.b16 %v337, %v336
    %v411 = vpack.c.b16 %v339, %v338
    %v412 = vpack.c.b16 %v341, %v340
    %v413 = vpack.c.b16 %v343, %v342
    %v414 = vpack.c.b16 %v345, %v344
    %v415 = vpack.c.b16 %v347, %v346
    %v416 = vpack.c.b16 %v349, %v348
    %v417 = vpack.c.b16 %v351, %v350
    %v418 = vpack.c.b16 %v353, %v352
    %v419 = vpack.c.b16 %v355, %v354
    %v420 = vpack.c.b16 %v357, %v356
    %v421 = vpack.c.b16 %v359, %v358
    %v422 = vpack.c.b16 %v361, %v360
    %v423 = vpack.c.b16 %v363, %v362
    %v424 = vpack.c.b16 %v365, %v364
    %v425 = vpack.c.b16 %v367, %v366
    %v426 = vpack.c.b16 %v369, %v368
    %v427 = vpack.c.b16 %v371, %v370
    %v428 = vpack.c.b16 %v373, %v372
    %v429 = vpack.c.b16 %v375, %v374
    %v430 = vpack.c.b16 %v377, %v376
    %v431 = vpack.c.b16 %v379, %v378
    %v432 = vpack.c.b16 %v381, %v380
    %v433 = vpack.c.b16 %v383, %v382
    %v434 = vpack.c.b16 %v385, %v384
    %v435 = vpack.c.b16 %v387, %v386
    %484 = vmatprep.subr.bf16.mxu0 0
    %485 = vmatpush1.bf16.msra.mxu0 %v388
    %486 = vmatprep.subr.bf16.mxu0 0
    %487 = vmatpush1.bf16.msra.mxu0 %v389
    %488 = vmatprep.subr.bf16.mxu0 0
    %489 = vmatpush1.bf16.msra.mxu0 %v390
    %490 = vmatprep.subr.bf16.mxu0 0
    %491 = vmatpush1.bf16.msra.mxu0 %v391
    %492 = vmatprep.subr.bf16.mxu0 0
    %493 = vmatpush1.bf16.msra.mxu0 %v392
    %494 = vmatprep.subr.bf16.mxu0 0
    %495 = vmatpush1.bf16.msra.mxu0 %v393
    %496 = vmatprep.subr.bf16.mxu0 0
    %497 = vmatpush1.bf16.msra.mxu0 %v394
    %498 = vmatprep.subr.bf16.mxu0 0
    %499 = vmatpush1.bf16.msra.mxu0 %v395
    %500 = vmatprep.subr.bf16.mxu0 0
    %501 = vmatpush1.bf16.msra.mxu0 %v396
    %502 = vmatprep.subr.bf16.mxu0 0
    %503 = vmatpush1.bf16.msra.mxu0 %v397
    %504 = vmatprep.subr.bf16.mxu0 0
    %505 = vmatpush1.bf16.msra.mxu0 %v398
    %506 = vmatprep.subr.bf16.mxu0 0
    %507 = vmatpush1.bf16.msra.mxu0 %v399
    %508 = vmatprep.subr.bf16.mxu0 0
    %509 = vmatpush1.bf16.msra.mxu0 %v400
    %510 = vmatprep.subr.bf16.mxu0 0
    %511 = vmatpush1.bf16.msra.mxu0 %v401
    %512 = vmatprep.subr.bf16.mxu0 0
    %513 = vmatpush1.bf16.msra.mxu0 %v402
    %514 = vmatprep.subr.bf16.mxu0 0
    %515 = vmatpush1.bf16.msra.mxu0 %v403
    %516 = vmatprep.mubr.bf16.mxu0 %v88
    %517 = vmatmul.mubr.bf16.gmra.mrb[0].mxu0 %v87
    %v518 = vpop.f32.mrb[0].mxu0
    %v519 = vadd.f32 %v194, %v518
    %v520 = vpop.f32.mrb[0].mxu0
    %v521 = vpop.f32.mrb[0].mxu0
    %v522 = vadd.f32 %v194, %v521
    %v523 = vpop.f32.mrb[0].mxu0
    %524 = vdwg.mxu0
    %525 = vmatprep.subr.bf16.mxu0 0
    %526 = vmatpush1.bf16.msra.mxu0 %v404
    %527 = vmatprep.subr.bf16.mxu0 0
    %528 = vmatpush1.bf16.msra.mxu0 %v405
    %529 = vmatprep.subr.bf16.mxu0 0
    %530 = vmatpush1.bf16.msra.mxu0 %v406
    %531 = vmatprep.subr.bf16.mxu0 0
    %532 = vmatpush1.bf16.msra.mxu0 %v407
    %533 = vmatprep.subr.bf16.mxu0 0
    %534 = vmatpush1.bf16.msra.mxu0 %v408
    %535 = vmatprep.subr.bf16.mxu0 0
    %536 = vmatpush1.bf16.msra.mxu0 %v409
    %537 = vmatprep.subr.bf16.mxu0 0
    %538 = vmatpush1.bf16.msra.mxu0 %v410
    %539 = vmatprep.subr.bf16.mxu0 0
    %540 = vmatpush1.bf16.msra.mxu0 %v411
    %541 = vmatprep.subr.bf16.mxu0 0
    %542 = vmatpush1.bf16.msra.mxu0 %v412
    %543 = vmatprep.subr.bf16.mxu0 0
    %544 = vmatpush1.bf16.msra.mxu0 %v413
    %545 = vmatprep.subr.bf16.mxu0 0
    %546 = vmatpush1.bf16.msra.mxu0 %v414
    %547 = vmatprep.subr.bf16.mxu0 0
    %548 = vmatpush1.bf16.msra.mxu0 %v415
    %549 = vmatprep.subr.bf16.mxu0 0
    %550 = vmatpush1.bf16.msra.mxu0 %v416
    %551 = vmatprep.subr.bf16.mxu0 0
    %552 = vmatpush1.bf16.msra.mxu0 %v417
    %553 = vmatprep.subr.bf16.mxu0 0
    %554 = vmatpush1.bf16.msra.mxu0 %v418
    %555 = vmatprep.subr.bf16.mxu0 0
    %556 = vmatpush1.bf16.msra.mxu0 %v419
    %557 = vmatprep.mubr.bf16.mxu0 %v90
    %558 = vmatmul.mubr.bf16.gmra.mrb[0].mxu0 %v89
    %v559 = vpop.f32.mrb[0].mxu0
    %v560 = vadd.f32 %v519, %v559
    %v561 = vpop.f32.mrb[0].mxu0
    %v562 = vpop.f32.mrb[0].mxu0
    %v563 = vadd.f32 %v522, %v562
    %v564 = vpop.f32.mrb[0].mxu0
    %565 = vdwg.mxu0
    %566 = vmatprep.subr.bf16.mxu0 0
    %567 = vmatpush1.bf16.msra.mxu0 %v420
    %568 = vmatprep.subr.bf16.mxu0 0
    %569 = vmatpush1.bf16.msra.mxu0 %v421
    %570 = vmatprep.subr.bf16.mxu0 0
    %571 = vmatpush1.bf16.msra.mxu0 %v422
    %572 = vmatprep.subr.bf16.mxu0 0
    %573 = vmatpush1.bf16.msra.mxu0 %v423
    %574 = vmatprep.subr.bf16.mxu0 0
    %575 = vmatpush1.bf16.msra.mxu0 %v424
    %576 = vmatprep.subr.bf16.mxu0 0
    %577 = vmatpush1.bf16.msra.mxu0 %v425
    %578 = vmatprep.subr.bf16.mxu0 0
    %579 = vmatpush1.bf16.msra.mxu0 %v426
    %580 = vmatprep.subr.bf16.mxu0 0
    %581 = vmatpush1.bf16.msra.mxu0 %v427
    %582 = vmatprep.subr.bf16.mxu0 0
    %583 = vmatpush1.bf16.msra.mxu0 %v428
    %584 = vmatprep.subr.bf16.mxu0 0
    %585 = vmatpush1.bf16.msra.mxu0 %v429
    %586 = vmatprep.subr.bf16.mxu0 0
    %587 = vmatpush1.bf16.msra.mxu0 %v430
    %588 = vmatprep.subr.bf16.mxu0 0
    %589 = vmatpush1.bf16.msra.mxu0 %v431
    %590 = vmatprep.subr.bf16.mxu0 0
    %591 = vmatpush1.bf16.msra.mxu0 %v432
    %592 = vmatprep.subr.bf16.mxu0 0
    %593 = vmatpush1.bf16.msra.mxu0 %v433
    %594 = vmatprep.subr.bf16.mxu0 0
    %595 = vmatpush1.bf16.msra.mxu0 %v434
    %596 = vmatprep.subr.bf16.mxu0 0
    %597 = vmatpush1.bf16.msra.mxu0 %v435
    %598 = vmatprep.mubr.bf16.mxu0 %v92
    %599 = vmatmul.mubr.bf16.gmra.mrb[0].mxu0 %v91
    %v600 = vpop.f32.mrb[0].mxu0
    %v601 = vadd.f32 %v560, %v600
    %v602 = vpop.f32.mrb[0].mxu0
    %v603 = vpop.f32.mrb[0].mxu0
    %v604 = vadd.f32 %v563, %v603
    %v605 = vpop.f32.mrb[0].mxu0
    %606 = vdwg.mxu0
    %607 = vst [vmem:[#allocation9] sm:$0xff] %v601
    %608 = vst [vmem:[#allocation9 + $0x8] sm:$0xff] %v604
    %v609 = vld [vmem:[%s3] sm:$0x1]
    %v610 = vld [vmem:[%s3 + $0x1] sm:$0x1]
    %v611 = vlaneseq
    %v612 = vshrl.u32 %v611, 7
    %v613 = vlaneseq
    %v614 = vshrl.u32 %v613, 7
    %v615 = vsub.s32 0, %v614
    %v616 = vrot.slane %v609, %v615
    %v617 = vlaneseq
    %v618 = vshrl.u32 %v617, 7
    %v619 = vsub.s32 0, %v618
    %v620 = vrot.slane %v610, %v619
    %vm621 = vcmp.lt.s32.totalorder %v612, %v616
    %vm622 = vcmp.lt.s32.totalorder %v612, %v620
    %v623 = vsel %vm621, 1, 0
    %v624 = vsel %vm622, 1, 0
    %v625 = vcvt.s32.f32 %v623
    %v626 = vcvt.s32.f32 %v624
    %628 = vset.pattern.permute.xlu0 0
    %629 = vperm.xlu0 %628, %v625
    %v630 = vpop.permute.xlu0 %629
    %633 = vset.pattern.permute.xlu0 0
    %634 = vperm.xlu0 %633, %v626
    %v635 = vpop.permute.xlu0 %634
    %v637 = vmul.f32 %v601, %v630
    %v638 = vmul.f32 %v604, %v635
    %v639 = vrot.slane %v637, 4
    %v640 = vadd.f32 %v637, %v639
    %v641 = vrot.slane %v640, 2
    %v642 = vadd.f32 %v640, %v641
    %v643 = vrot.slane %v642, 1
    %v644 = vadd.f32 %v642, %v643
    %v645 = vrot.slane %v638, 4
    %v646 = vadd.f32 %v638, %v645
    %v647 = vrot.slane %v646, 2
    %v648 = vadd.f32 %v646, %v647
    %v649 = vrot.slane %v648, 1
    %v650 = vadd.f32 %v648, %v649
    %v651 = vmul.f32 %v644, %v644
    %v652 = vmul.f32 %v650, %v650
    %vm655 = vcmask 1041409
    %v656 = vsel %vm655, %v652, %v651
    %vm658 = vcmask 1041408
    %v659 = vsel %vm658, %v656, 0.0
    %660 = vadd.xlane.f32.xlu0 %v659
    %v661 = vpop.xlane.xlu0 %660
    %v662 = vrsqrt.pop %v661
    %v663 = vmul.f32 %v661, %v662
    %vm664 = vcmp.eq.f32.partialorder %v661, inf
    %v665 = vsel %vm664, %v661, %v663
    %vm666 = vcmp.eq.f32.partialorder %v661, 0.0
    %v667 = vand.u32 %v661, 2147483648
    %v668 = vsel %vm666, %v667, %v665
    %v669 = vadd.f32 %v668, 1e-08
    %v671 = vrot.slane %v669, 1
    %v674 = vrcp.pop %v669
    %v675 = vmul.f32 %v644, %v674
    %v676 = vrcp.pop %v671
    %v677 = vmul.f32 %v650, %v676
    %v680 = vrot.slane %v677, 7
    %v681 = vsel %vm655, %v680, %v675
    %683 = vst [vmem:[#allocation10] sm:$0x3] %v681
    // Predicated region
    $region32: #{tpu_custom_call.1} parent=1 // pred_check
      _
    $region33: #{tpu_custom_call.1} parent=1 // pred_check_branch
      %685 = sbr.rel (0) target = $region35
    $region34: #{tpu_custom_call.1} parent=1 // pred_region
      %s687 = ssub.s32 256, 256
      %688 = vsyncadd [#allocation8], %s687
      %s689 = sshll.u32 [#allocation9], 4
      %s690 = int_to_ptr.vmem [resolvable:$true] %s689
      %695 = dma.vmem_to_hbm [thread:$0]  %s690, 256, %s5, [#allocation8], 128, 128, 8
    $region35: #{tpu_custom_call.1} parent=1 // pred_fallthru
      _
    // Predicated region
    $region36: #{tpu_custom_call.1} parent=1 // pred_check
      _
    $region37: #{tpu_custom_call.1} parent=1 // pred_check_branch
      %697 = sbr.rel (0) target = $region39
    $region38: #{tpu_custom_call.1} parent=1 // pred_region
      %s699 = ssub.s32 32, 32
      %700 = vsyncadd [#allocation11], %s699
      %s702 = sshll.u32 [#allocation10], 4
      %s703 = int_to_ptr.vmem [resolvable:$true] %s702
      %705 = dma.vmem_to_hbm [thread:$0]  %s703, 32, %s6, [#allocation11]
    $region39: #{tpu_custom_call.1} parent=1 // pred_fallthru
      _
    // Predicated region
    $region40: #{tpu_custom_call.1} parent=1 // pred_check
      _
    $region41: #{tpu_custom_call.1} parent=1 // pred_check_branch
      %707 = sbr.rel (0) target = $region43
    $region42: #{tpu_custom_call.1} parent=1 // pred_region
      %708 = dma.done [#allocation8], 256
    $region43: #{tpu_custom_call.1} parent=1 // pred_fallthru
      _
    // Predicated region
    $region44: #{tpu_custom_call.1} parent=1 // pred_check
      _
    $region45: #{tpu_custom_call.1} parent=1 // pred_check_branch
      %710 = sbr.rel (0) target = $region47
    $region46: #{tpu_custom_call.1} parent=1 // pred_region
      %711 = dma.done [#allocation11], 32
    $region47: #{tpu_custom_call.1} parent=1 // pred_fallthru
      _
    %712 = vsyncpa [#allocation7], 1
    %713 = vsyncpa [#allocation8], 1
    %714 = vsyncpa [#allocation11], 1
  %715 = vsyncmov [#allocation3]
  %s716 = vpop.sfrf %715
  %p717 = scmp.eq.s32.totalorder %s716, 0
  %p718 = pneg %p717
  %720 = shalt.err (%p718)

// kernel: tpu_custom_call.1
$region0: #{tpu_custom_call.1}
  #allocation0 [shape = 'u32[]', space=smem, size = 0x4, offset = 0x4, fixed_abs, tag = 'smem constant byte address 0x4 - core index']
  #allocation1 [shape = 'u32[144,128]{1,0:T(1,128)}', space=vmem, size = 0x12000, scoped, tag = 'internal scratch']
  #allocation2 [shape = 'f32[16,768]{1,0:T(8,128)}', space=vmem, size = 0xc000, scoped, tag = 'scratch operand']
  #allocation3 [shape = 's32[1]{0}', space=sflag, size = 0x4, scoped, tag = 'scratch operand']
  #allocation4 [shape = 's32[1]{0}', space=sflag, size = 0x4, scoped, tag = 'scoped memory for tpu_custom_call.1']
  #allocation5 [shape = 'u8[512]{0}', space=smem, size = 0x200, scoped, tag = 'prefetched SMEM operand 0']
  #allocation12 [shape = 's32[]', space=sflag, size = 0x4, offset = 0, fixed_abs, tag = 'sflag constant byte address 0x0 - dummy sync flag']
  %s0 = inlined_call_operand.vmem [shape: s32[16], index: 0, kind: input, shape index: {}]
  %s1 = inlined_call_operand.hbm [shape: bf16[768,128], index: 1, kind: input, shape index: {}]
  %s2 = inlined_call_operand.vmem [shape: f32[1,128], index: 2, kind: input, shape index: {}]
  %s3 = inlined_call_operand.vmem [shape: s32[2,1,1], index: 3, kind: input, shape index: {}]
  %s4 = inlined_call_operand.hbm [shape: f32[100,768], index: 4, kind: input, shape index: {}]
  %s5 = inlined_call_operand.hbm [shape: f32[2,8,128], index: 5, kind: output, shape index: {0}]
  %s6 = inlined_call_operand.hbm [shape: f32[2,128], index: 6, kind: output, shape index: {1}]
  %7 = xla_tuple %s5, %s6
  %s8 = sld [smem:[#allocation0]]
  $region48: #{tpu_custom_call.1} parent=0
    _
  %s10 = ssub.s32 1, %s8
  %s11 = scalar_select 0, %s10, %s8
  %s12 = sshll.u32 %s0, 4
  %s13 = int_to_ptr.vmem [resolvable:$true] %s12
  %15 = dma.vmem_to_smem %s13, 16, [#allocation5], [#allocation4]
  %16 = dma.done [#allocation4], 16
  %17 = sfence
  $region1: #{tpu_custom_call.1} parent=0
    #allocation6 [shape = 'u8[196608]{0}', space=vmem, size = 0x30000, scoped, tag = 'input window, operand 1, single buffered']
    #allocation7 [shape = 's32[1]{0}', space=sflag, size = 0x4, scoped, tag = 'scoped memory for tpu_custom_call.1']
    #allocation8 [shape = 's32[1]{0}', space=sflag, size = 0x4, scoped, tag = 'scoped memory for tpu_custom_call.1']
    #allocation9 [shape = 'u8[8192]{0}', space=vmem, size = 0x2000, scoped, tag = 'output window, operand 0, single buffered']
    #allocation10 [shape = 'u8[1024]{0}', space=vmem, size = 0x400, scoped, tag = 'output window, operand 1, single buffered']
    #allocation11 [shape = 's32[1]{0}', space=sflag, size = 0x4, scoped, tag = 'scoped memory for tpu_custom_call.1']
    %18 = vsyncpa [#allocation7], 0
    %19 = vsyncpa [#allocation8], 0
    %20 = vsyncpa [#allocation11], 0
    // Predicated region
    $region2: #{tpu_custom_call.1} parent=1 // pred_check
      _
    $region3: #{tpu_custom_call.1} parent=1 // pred_check_branch
      %22 = sbr.rel (0) target = $region5
    $region4: #{tpu_custom_call.1} parent=1 // pred_region
      %s24 = ssub.s32 6144, 6144
      %25 = vsyncadd [#allocation7], %s24
      %s26 = sshll.u32 [#allocation6], 4
      %s27 = int_to_ptr.vmem [resolvable:$true] %s26
      %32 = dma.hbm_to_vmem [thread:$0]  %s1, 6144, %s27, [#allocation7], 64, 64, 4
    $region5: #{tpu_custom_call.1} parent=1 // pred_fallthru
      _
    // Predicated region
    $region6: #{tpu_custom_call.1} parent=1 // pred_check
      _
    $region7: #{tpu_custom_call.1} parent=1 // pred_check_branch
      %34 = sbr.rel (0) target = $region9
    $region8: #{tpu_custom_call.1} parent=1 // pred_region
      _
    $region9: #{tpu_custom_call.1} parent=1 // pred_fallthru
      _
    // Predicated region
    $region10: #{tpu_custom_call.1} parent=1 // pred_check
      _
    $region11: #{tpu_custom_call.1} parent=1 // pred_check_branch
      %36 = sbr.rel (0) target = $region13
    $region12: #{tpu_custom_call.1} parent=1 // pred_region
      _
    $region13: #{tpu_custom_call.1} parent=1 // pred_fallthru
      _
    // Predicated region
    $region14: #{tpu_custom_call.1} parent=1 // pred_check
      _
    $region15: #{tpu_custom_call.1} parent=1 // pred_check_branch
      %38 = sbr.rel (0) target = $region17
    $region16: #{tpu_custom_call.1} parent=1 // pred_region
      %39 = dma.done [#allocation7], 6144
    $region17: #{tpu_custom_call.1} parent=1 // pred_fallthru
      _
    %s41 = smul.u32 0, 16
    loop: start=0, step=1, limit=16
    $region18: #{tpu_custom_call.1} parent=1 // loop_pre_header
      _
    $region19: #{tpu_custom_call.1} parent=1 // loop_header
      %s43 = sphi 0, %s47
      %p44 = scmp.ge.s32.totalorder %s43, 16
    $region20: #{tpu_custom_call.1} parent=1 // loop_header_branch
      %46 = sbr.rel (%p44) target = $region24
    $region21: #{tpu_custom_call.1} parent=1 // loop_body
      %s48 = sadd.s32 %s41, %s43
      %s49 = sld [smem:[#allocation5 + %s48]]
      %s50 = sshrl.u32 %s49, 3
      %s51 = sand.u32 %s49, 7
      %s52 = smul.u32 %s50, 48
      %s53 = sadd.s32 %s51, %s52
      %s54 = smul.addr %s53, 16
      %s55 = scalar_lea.hbm %s4, %s54
      %s56 = sshrl.u32 %s43, 3
      %s57 = sand.u32 %s43, 7
      %s58 = smul.u32 %s56, 48
      %s59 = sadd.s32 %s57, %s58
      %s60 = scalar_lea.vmem [#allocation2], %s59
      %s62 = sshll.u32 %s60, 4
      %s63 = int_to_ptr.vmem [resolvable:$true] %s62
      %65 = dma.hbm_to_vmem [thread:$0]  %s55, 96, %s63, [#allocation3], 128, 128, 1
    $region22: #{tpu_custom_call.1} parent=1 // loop_footer
      %s47 = sadd.s32 1, %s43
    $region23: #{tpu_custom_call.1} parent=1 // loop_footer_branch
      %42 = sbr.rel target = $region19
    $region24: #{tpu_custom_call.1} parent=1 // loop_exit
      _
    loop: start=0, step=1, limit=16
    $region25: #{tpu_custom_call.1} parent=1 // loop_pre_header
      _
    $region26: #{tpu_custom_call.1} parent=1 // loop_header
      %s67 = sphi 0, %s71
      %p68 = scmp.ge.s32.totalorder %s67, 16
    $region27: #{tpu_custom_call.1} parent=1 // loop_header_branch
      %70 = sbr.rel (%p68) target = $region31
    $region28: #{tpu_custom_call.1} parent=1 // loop_body
      %s72 = smul.u32 1, 6
      %s73 = sshll.u32 %s72, 4
      %74 = dma.done [#allocation3], %s73
    $region29: #{tpu_custom_call.1} parent=1 // loop_footer
      %s71 = sadd.s32 1, %s67
    $region30: #{tpu_custom_call.1} parent=1 // loop_footer_branch
      %66 = sbr.rel target = $region26
    $region31: #{tpu_custom_call.1} parent=1 // loop_exit
      _
    %v75 = vld [vmem:[#allocation2] sm:$0xff]
    %v76 = vld [vmem:[#allocation2 + $0x8] sm:$0xff]
    %v77 = vld [vmem:[#allocation2 + $0x10] sm:$0xff]
    %v78 = vld [vmem:[#allocation2 + $0x18] sm:$0xff]
    %v79 = vld [vmem:[#allocation2 + $0x20] sm:$0xff]
    %v80 = vld [vmem:[#allocation2 + $0x28] sm:$0xff]
    %v81 = vld [vmem:[#allocation2 + $0x30] sm:$0xff]
    %v82 = vld [vmem:[#allocation2 + $0x38] sm:$0xff]
    %v83 = vld [vmem:[#allocation2 + $0x40] sm:$0xff]
    %v84 = vld [vmem:[#allocation2 + $0x48] sm:$0xff]
    %v85 = vld [vmem:[#allocation2 + $0x50] sm:$0xff]
    %v86 = vld [vmem:[#allocation2 + $0x58] sm:$0xff]
    %v87 = vpack.c.bf16 %v81, %v75
    %v88 = vpack.c.bf16 %v82, %v76
    %v89 = vpack.c.bf16 %v83, %v77
    %v90 = vpack.c.bf16 %v84, %v78
    %v91 = vpack.c.bf16 %v85, %v79
    %v92 = vpack.c.bf16 %v86, %v80
    %v93 = vld [vmem:[#allocation6] sm:$0xf]
    %v94 = vld [vmem:[#allocation6 + $0x4] sm:$0xf]
    %v95 = vld [vmem:[#allocation6 + $0x8] sm:$0xf]
    %v96 = vld [vmem:[#allocation6 + $0xc] sm:$0xf]
    %v97 = vld [vmem:[#allocation6 + $0x10] sm:$0xf]
    %v98 = vld [vmem:[#allocation6 + $0x14] sm:$0xf]
    %v99 = vld [vmem:[#allocation6 + $0x18] sm:$0xf]
    %v100 = vld [vmem:[#allocation6 + $0x1c] sm:$0xf]
    %v101 = vld [vmem:[#allocation6 + $0x20] sm:$0xf]
    %v102 = vld [vmem:[#allocation6 + $0x24] sm:$0xf]
    %v103 = vld [vmem:[#allocation6 + $0x28] sm:$0xf]
    %v104 = vld [vmem:[#allocation6 + $0x2c] sm:$0xf]
    %v105 = vld [vmem:[#allocation6 + $0x30] sm:$0xf]
    %v106 = vld [vmem:[#allocation6 + $0x34] sm:$0xf]
    %v107 = vld [vmem:[#allocation6 + $0x38] sm:$0xf]
    %v108 = vld [vmem:[#allocation6 + $0x3c] sm:$0xf]
    %v109 = vld [vmem:[#allocation6 + $0x40] sm:$0xf]
    %v110 = vld [vmem:[#allocation6 + $0x44] sm:$0xf]
    %v111 = vld [vmem:[#allocation6 + $0x48] sm:$0xf]
    %v112 = vld [vmem:[#allocation6 + $0x4c] sm:$0xf]
    %v113 = vld [vmem:[#allocation6 + $0x50] sm:$0xf]
    %v114 = vld [vmem:[#allocation6 + $0x54] sm:$0xf]
    %v115 = vld [vmem:[#allocation6 + $0x58] sm:$0xf]
    %v116 = vld [vmem:[#allocation6 + $0x5c] sm:$0xf]
    %v117 = vld [vmem:[#allocation6 + $0x60] sm:$0xf]
    %v118 = vld [vmem:[#allocation6 + $0x64] sm:$0xf]
    %v119 = vld [vmem:[#allocation6 + $0x68] sm:$0xf]
    %v120 = vld [vmem:[#allocation6 + $0x6c] sm:$0xf]
    %v121 = vld [vmem:[#allocation6 + $0x70] sm:$0xf]
    %v122 = vld [vmem:[#allocation6 + $0x74] sm:$0xf]
    %v123 = vld [vmem:[#allocation6 + $0x78] sm:$0xf]
    %v124 = vld [vmem:[#allocation6 + $0x7c] sm:$0xf]
    %v125 = vld [vmem:[#allocation6 + $0x80] sm:$0xf]
    %v126 = vld [vmem:[#allocation6 + $0x84] sm:$0xf]
    %v127 = vld [vmem:[#allocation6 + $0x88] sm:$0xf]
    %v128 = vld [vmem:[#allocation6 + $0x8c] sm:$0xf]
    %v129 = vld [vmem:[#allocation6 + $0x90] sm:$0xf]
    %v130 = vld [vmem:[#allocation6 + $0x94] sm:$0xf]
    %v131 = vld [vmem:[#allocation6 + $0x98] sm:$0xf]
    %v132 = vld [vmem:[#allocation6 + $0x9c] sm:$0xf]
    %v133 = vld [vmem:[#allocation6 + $0xa0] sm:$0xf]
    %v134 = vld [vmem:[#allocation6 + $0xa4] sm:$0xf]
    %v135 = vld [vmem:[#allocation6 + $0xa8] sm:$0xf]
    %v136 = vld [vmem:[#allocation6 + $0xac] sm:$0xf]
    %v137 = vld [vmem:[#allocation6 + $0xb0] sm:$0xf]
    %v138 = vld [vmem:[#allocation6 + $0xb4] sm:$0xf]
    %v139 = vld [vmem:[#allocation6 + $0xb8] sm:$0xf]
    %v140 = vld [vmem:[#allocation6 + $0xbc] sm:$0xf]
    %v141 = vld [vmem:[#allocation6 + $0xc0] sm:$0xf]
    %v142 = vld [vmem:[#allocation6 + $0xc4] sm:$0xf]
    %v143 = vld [vmem:[#allocation6 + $0xc8] sm:$0xf]
    %v144 = vld [vmem:[#allocation6 + $0xcc] sm:$0xf]
    %v145 = vld [vmem:[#allocation6 + $0xd0] sm:$0xf]
    %v146 = vld [vmem:[#allocation6 + $0xd4] sm:$0xf]
    %v147 = vld [vmem:[#allocation6 + $0xd8] sm:$0xf]
    %v148 = vld [vmem:[#allocation6 + $0xdc] sm:$0xf]
    %v149 = vld [vmem:[#allocation6 + $0xe0] sm:$0xf]
    %v150 = vld [vmem:[#allocation6 + $0xe4] sm:$0xf]
    %v151 = vld [vmem:[#allocation6 + $0xe8] sm:$0xf]
    %v152 = vld [vmem:[#allocation6 + $0xec] sm:$0xf]
    %v153 = vld [vmem:[#allocation6 + $0xf0] sm:$0xf]
    %v154 = vld [vmem:[#allocation6 + $0xf4] sm:$0xf]
    %v155 = vld [vmem:[#allocation6 + $0xf8] sm:$0xf]
    %v156 = vld [vmem:[#allocation6 + $0xfc] sm:$0xf]
    %v157 = vld [vmem:[#allocation6 + $0x100] sm:$0xf]
    %v158 = vld [vmem:[#allocation6 + $0x104] sm:$0xf]
    %v159 = vld [vmem:[#allocation6 + $0x108] sm:$0xf]
    %v160 = vld [vmem:[#allocation6 + $0x10c] sm:$0xf]
    %v161 = vld [vmem:[#allocation6 + $0x110] sm:$0xf]
    %v162 = vld [vmem:[#allocation6 + $0x114] sm:$0xf]
    %v163 = vld [vmem:[#allocation6 + $0x118] sm:$0xf]
    %v164 = vld [vmem:[#allocation6 + $0x11c] sm:$0xf]
    %v165 = vld [vmem:[#allocation6 + $0x120] sm:$0xf]
    %v166 = vld [vmem:[#allocation6 + $0x124] sm:$0xf]
    %v167 = vld [vmem:[#allocation6 + $0x128] sm:$0xf]
    %v168 = vld [vmem:[#allocation6 + $0x12c] sm:$0xf]
    %v169 = vld [vmem:[#allocation6 + $0x130] sm:$0xf]
    %v170 = vld [vmem:[#allocation6 + $0x134] sm:$0xf]
    %v171 = vld [vmem:[#allocation6 + $0x138] sm:$0xf]
    %v172 = vld [vmem:[#allocation6 + $0x13c] sm:$0xf]
    %v173 = vld [vmem:[#allocation6 + $0x140] sm:$0xf]
    %v174 = vld [vmem:[#allocation6 + $0x144] sm:$0xf]
    %v175 = vld [vmem:[#allocation6 + $0x148] sm:$0xf]
    %v176 = vld [vmem:[#allocation6 + $0x14c] sm:$0xf]
    %v177 = vld [vmem:[#allocation6 + $0x150] sm:$0xf]
    %v178 = vld [vmem:[#allocation6 + $0x154] sm:$0xf]
    %v179 = vld [vmem:[#allocation6 + $0x158] sm:$0xf]
    %v180 = vld [vmem:[#allocation6 + $0x15c] sm:$0xf]
    %v181 = vld [vmem:[#allocation6 + $0x160] sm:$0xf]
    %v182 = vld [vmem:[#allocation6 + $0x164] sm:$0xf]
    %v183 = vld [vmem:[#allocation6 + $0x168] sm:$0xf]
    %v184 = vld [vmem:[#allocation6 + $0x16c] sm:$0xf]
    %v185 = vld [vmem:[#allocation6 + $0x170] sm:$0xf]
    %v186 = vld [vmem:[#allocation6 + $0x174] sm:$0xf]
    %v187 = vld [vmem:[#allocation6 + $0x178] sm:$0xf]
    %v188 = vld [vmem:[#allocation6 + $0x17c] sm:$0xf]
    %v189 = vld [vmem:[%s2] sm:$0x1]
    %v191 = vlaneseq
    %v192 = vshrl.u32 %v191, 7
    %v193 = vsub.s32 0, %v192
    %v194 = vrot.slane %v189, %v193
    %v292 = vunpack.c.l.b16 %v93
    %v293 = vunpack.c.l.b16 %v94
    %v294 = vunpack.c.l.b16 %v95
    %v295 = vunpack.c.l.b16 %v96
    %v296 = vunpack.c.l.b16 %v97
    %v297 = vunpack.c.l.b16 %v98
    %v298 = vunpack.c.l.b16 %v99
    %v299 = vunpack.c.l.b16 %v100
    %v300 = vunpack.c.l.b16 %v101
    %v301 = vunpack.c.l.b16 %v102
    %v302 = vunpack.c.l.b16 %v103
    %v303 = vunpack.c.l.b16 %v104
    %v304 = vunpack.c.l.b16 %v105
    %v305 = vunpack.c.l.b16 %v106
    %v306 = vunpack.c.l.b16 %v107
    %v307 = vunpack.c.l.b16 %v108
    %v308 = vunpack.c.l.b16 %v109
    %v309 = vunpack.c.l.b16 %v110
    %v310 = vunpack.c.l.b16 %v111
    %v311 = vunpack.c.l.b16 %v112
    %v312 = vunpack.c.l.b16 %v113
    %v313 = vunpack.c.l.b16 %v114
    %v314 = vunpack.c.l.b16 %v115
    %v315 = vunpack.c.l.b16 %v116
    %v316 = vunpack.c.l.b16 %v117
    %v317 = vunpack.c.l.b16 %v118
    %v318 = vunpack.c.l.b16 %v119
    %v319 = vunpack.c.l.b16 %v120
    %v320 = vunpack.c.l.b16 %v121
    %v321 = vunpack.c.l.b16 %v122
    %v322 = vunpack.c.l.b16 %v123
    %v323 = vunpack.c.l.b16 %v124
    %v324 = vunpack.c.l.b16 %v125
    %v325 = vunpack.c.l.b16 %v126
    %v326 = vunpack.c.l.b16 %v127
    %v327 = vunpack.c.l.b16 %v128
    %v328 = vunpack.c.l.b16 %v129
    %v329 = vunpack.c.l.b16 %v130
    %v330 = vunpack.c.l.b16 %v131
    %v331 = vunpack.c.l.b16 %v132
    %v332 = vunpack.c.l.b16 %v133
    %v333 = vunpack.c.l.b16 %v134
    %v334 = vunpack.c.l.b16 %v135
    %v335 = vunpack.c.l.b16 %v136
    %v336 = vunpack.c.l.b16 %v137
    %v337 = vunpack.c.l.b16 %v138
    %v338 = vunpack.c.l.b16 %v139
    %v339 = vunpack.c.l.b16 %v140
    %v340 = vunpack.c.l.b16 %v141
    %v341 = vunpack.c.l.b16 %v142
    %v342 = vunpack.c.l.b16 %v143
    %v343 = vunpack.c.l.b16 %v144
    %v344 = vunpack.c.l.b16 %v145
    %v345 = vunpack.c.l.b16 %v146
    %v346 = vunpack.c.l.b16 %v147
    %v347 = vunpack.c.l.b16 %v148
    %v348 = vunpack.c.l.b16 %v149
    %v349 = vunpack.c.l.b16 %v150
    %v350 = vunpack.c.l.b16 %v151
    %v351 = vunpack.c.l.b16 %v152
    %v352 = vunpack.c.l.b16 %v153
    %v353 = vunpack.c.l.b16 %v154
    %v354 = vunpack.c.l.b16 %v155
    %v355 = vunpack.c.l.b16 %v156
    %v356 = vunpack.c.l.b16 %v157
    %v357 = vunpack.c.l.b16 %v158
    %v358 = vunpack.c.l.b16 %v159
    %v359 = vunpack.c.l.b16 %v160
    %v360 = vunpack.c.l.b16 %v161
    %v361 = vunpack.c.l.b16 %v162
    %v362 = vunpack.c.l.b16 %v163
    %v363 = vunpack.c.l.b16 %v164
    %v364 = vunpack.c.l.b16 %v165
    %v365 = vunpack.c.l.b16 %v166
    %v366 = vunpack.c.l.b16 %v167
    %v367 = vunpack.c.l.b16 %v168
    %v368 = vunpack.c.l.b16 %v169
    %v369 = vunpack.c.l.b16 %v170
    %v370 = vunpack.c.l.b16 %v171
    %v371 = vunpack.c.l.b16 %v172
    %v372 = vunpack.c.l.b16 %v173
    %v373 = vunpack.c.l.b16 %v174
    %v374 = vunpack.c.l.b16 %v175
    %v375 = vunpack.c.l.b16 %v176
    %v376 = vunpack.c.l.b16 %v177
    %v377 = vunpack.c.l.b16 %v178
    %v378 = vunpack.c.l.b16 %v179
    %v379 = vunpack.c.l.b16 %v180
    %v380 = vunpack.c.l.b16 %v181
    %v381 = vunpack.c.l.b16 %v182
    %v382 = vunpack.c.l.b16 %v183
    %v383 = vunpack.c.l.b16 %v184
    %v384 = vunpack.c.l.b16 %v185
    %v385 = vunpack.c.l.b16 %v186
    %v386 = vunpack.c.l.b16 %v187
    %v387 = vunpack.c.l.b16 %v188
    %v388 = vpack.c.b16 %v293, %v292
    %v389 = vpack.c.b16 %v295, %v294
    %v390 = vpack.c.b16 %v297, %v296
    %v391 = vpack.c.b16 %v299, %v298
    %v392 = vpack.c.b16 %v301, %v300
    %v393 = vpack.c.b16 %v303, %v302
    %v394 = vpack.c.b16 %v305, %v304
    %v395 = vpack.c.b16 %v307, %v306
    %v396 = vpack.c.b16 %v309, %v308
    %v397 = vpack.c.b16 %v311, %v310
    %v398 = vpack.c.b16 %v313, %v312
    %v399 = vpack.c.b16 %v315, %v314
    %v400 = vpack.c.b16 %v317, %v316
    %v401 = vpack.c.b16 %v319, %v318
    %v402 = vpack.c.b16 %v321, %v320
    %v403 = vpack.c.b16 %v323, %v322
    %v404 = vpack.c.b16 %v325, %v324
    %v405 = vpack.c.b16 %v327, %v326
    %v406 = vpack.c.b16 %v329, %v328
    %v407 = vpack.c.b16 %v331, %v330
    %v408 = vpack.c.b16 %v333, %v332
    %v409 = vpack.c.b16 %v335, %v334
    %v410 = vpack.c.b16 %v337, %v336
    %v411 = vpack.c.b16 %v339, %v338
    %v412 = vpack.c.b16 %v341, %v340
    %v413 = vpack.c.b16 %v343, %v342
    %v414 = vpack.c.b16 %v345, %v344
    %v415 = vpack.c.b16 %v347, %v346
    %v416 = vpack.c.b16 %v349, %v348
    %v417 = vpack.c.b16 %v351, %v350
    %v418 = vpack.c.b16 %v353, %v352
    %v419 = vpack.c.b16 %v355, %v354
    %v420 = vpack.c.b16 %v357, %v356
    %v421 = vpack.c.b16 %v359, %v358
    %v422 = vpack.c.b16 %v361, %v360
    %v423 = vpack.c.b16 %v363, %v362
    %v424 = vpack.c.b16 %v365, %v364
    %v425 = vpack.c.b16 %v367, %v366
    %v426 = vpack.c.b16 %v369, %v368
    %v427 = vpack.c.b16 %v371, %v370
    %v428 = vpack.c.b16 %v373, %v372
    %v429 = vpack.c.b16 %v375, %v374
    %v430 = vpack.c.b16 %v377, %v376
    %v431 = vpack.c.b16 %v379, %v378
    %v432 = vpack.c.b16 %v381, %v380
    %v433 = vpack.c.b16 %v383, %v382
    %v434 = vpack.c.b16 %v385, %v384
    %v435 = vpack.c.b16 %v387, %v386
    %484 = vmatprep.subr.bf16.mxu0 0
    %485 = vmatpush1.bf16.msra.mxu0 %v388
    %486 = vmatprep.subr.bf16.mxu0 0
    %487 = vmatpush1.bf16.msra.mxu0 %v389
    %488 = vmatprep.subr.bf16.mxu0 0
    %489 = vmatpush1.bf16.msra.mxu0 %v390
    %490 = vmatprep.subr.bf16.mxu0 0
    %491 = vmatpush1.bf16.msra.mxu0 %v391
    %492 = vmatprep.subr.bf16.mxu0 0
    %493 = vmatpush1.bf16.msra.mxu0 %v392
    %494 = vmatprep.subr.bf16.mxu0 0
    %495 = vmatpush1.bf16.msra.mxu0 %v393
    %496 = vmatprep.subr.bf16.mxu0 0
    %497 = vmatpush1.bf16.msra.mxu0 %v394
    %498 = vmatprep.subr.bf16.mxu0 0
    %499 = vmatpush1.bf16.msra.mxu0 %v395
    %500 = vmatprep.subr.bf16.mxu0 0
    %501 = vmatpush1.bf16.msra.mxu0 %v396
    %502 = vmatprep.subr.bf16.mxu0 0
    %503 = vmatpush1.bf16.msra.mxu0 %v397
    %504 = vmatprep.subr.bf16.mxu0 0
    %505 = vmatpush1.bf16.msra.mxu0 %v398
    %506 = vmatprep.subr.bf16.mxu0 0
    %507 = vmatpush1.bf16.msra.mxu0 %v399
    %508 = vmatprep.subr.bf16.mxu0 0
    %509 = vmatpush1.bf16.msra.mxu0 %v400
    %510 = vmatprep.subr.bf16.mxu0 0
    %511 = vmatpush1.bf16.msra.mxu0 %v401
    %512 = vmatprep.subr.bf16.mxu0 0
    %513 = vmatpush1.bf16.msra.mxu0 %v402
    %514 = vmatprep.subr.bf16.mxu0 0
    %515 = vmatpush1.bf16.msra.mxu0 %v403
    %516 = vmatprep.mubr.bf16.mxu0 %v88
    %517 = vmatmul.mubr.bf16.gmra.mrb[0].mxu0 %v87
    %v518 = vpop.f32.mrb[0].mxu0
    %v519 = vadd.f32 %v194, %v518
    %v520 = vpop.f32.mrb[0].mxu0
    %v521 = vpop.f32.mrb[0].mxu0
    %v522 = vadd.f32 %v194, %v521
    %v523 = vpop.f32.mrb[0].mxu0
    %524 = vdwg.mxu0
    %525 = vmatprep.subr.bf16.mxu0 0
    %526 = vmatpush1.bf16.msra.mxu0 %v404
    %527 = vmatprep.subr.bf16.mxu0 0
    %528 = vmatpush1.bf16.msra.mxu0 %v405
    %529 = vmatprep.subr.bf16.mxu0 0
    %530 = vmatpush1.bf16.msra.mxu0 %v406
    %531 = vmatprep.subr.bf16.mxu0 0
    %532 = vmatpush1.bf16.msra.mxu0 %v407
    %533 = vmatprep.subr.bf16.mxu0 0
    %534 = vmatpush1.bf16.msra.mxu0 %v408
    %535 = vmatprep.subr.bf16.mxu0 0
    %536 = vmatpush1.bf16.msra.mxu0 %v409
    %537 = vmatprep.subr.bf16.mxu0 0
    %538 = vmatpush1.bf16.msra.mxu0 %v410
    %539 = vmatprep.subr.bf16.mxu0 0
    %540 = vmatpush1.bf16.msra.mxu0 %v411
    %541 = vmatprep.subr.bf16.mxu0 0
    %542 = vmatpush1.bf16.msra.mxu0 %v412
    %543 = vmatprep.subr.bf16.mxu0 0
    %544 = vmatpush1.bf16.msra.mxu0 %v413
    %545 = vmatprep.subr.bf16.mxu0 0
    %546 = vmatpush1.bf16.msra.mxu0 %v414
    %547 = vmatprep.subr.bf16.mxu0 0
    %548 = vmatpush1.bf16.msra.mxu0 %v415
    %549 = vmatprep.subr.bf16.mxu0 0
    %550 = vmatpush1.bf16.msra.mxu0 %v416
    %551 = vmatprep.subr.bf16.mxu0 0
    %552 = vmatpush1.bf16.msra.mxu0 %v417
    %553 = vmatprep.subr.bf16.mxu0 0
    %554 = vmatpush1.bf16.msra.mxu0 %v418
    %555 = vmatprep.subr.bf16.mxu0 0
    %556 = vmatpush1.bf16.msra.mxu0 %v419
    %557 = vmatprep.mubr.bf16.mxu0 %v90
    %558 = vmatmul.mubr.bf16.gmra.mrb[0].mxu0 %v89
    %v559 = vpop.f32.mrb[0].mxu0
    %v560 = vadd.f32 %v519, %v559
    %v561 = vpop.f32.mrb[0].mxu0
    %v562 = vpop.f32.mrb[0].mxu0
    %v563 = vadd.f32 %v522, %v562
    %v564 = vpop.f32.mrb[0].mxu0
    %565 = vdwg.mxu0
    %566 = vmatprep.subr.bf16.mxu0 0
    %567 = vmatpush1.bf16.msra.mxu0 %v420
    %568 = vmatprep.subr.bf16.mxu0 0
    %569 = vmatpush1.bf16.msra.mxu0 %v421
    %570 = vmatprep.subr.bf16.mxu0 0
    %571 = vmatpush1.bf16.msra.mxu0 %v422
    %572 = vmatprep.subr.bf16.mxu0 0
    %573 = vmatpush1.bf16.msra.mxu0 %v423
    %574 = vmatprep.subr.bf16.mxu0 0
    %575 = vmatpush1.bf16.msra.mxu0 %v424
    %576 = vmatprep.subr.bf16.mxu0 0
    %577 = vmatpush1.bf16.msra.mxu0 %v425
    %578 = vmatprep.subr.bf16.mxu0 0
    %579 = vmatpush1.bf16.msra.mxu0 %v426
    %580 = vmatprep.subr.bf16.mxu0 0
    %581 = vmatpush1.bf16.msra.mxu0 %v427
    %582 = vmatprep.subr.bf16.mxu0 0
    %583 = vmatpush1.bf16.msra.mxu0 %v428
    %584 = vmatprep.subr.bf16.mxu0 0
    %585 = vmatpush1.bf16.msra.mxu0 %v429
    %586 = vmatprep.subr.bf16.mxu0 0
    %587 = vmatpush1.bf16.msra.mxu0 %v430
    %588 = vmatprep.subr.bf16.mxu0 0
    %589 = vmatpush1.bf16.msra.mxu0 %v431
    %590 = vmatprep.subr.bf16.mxu0 0
    %591 = vmatpush1.bf16.msra.mxu0 %v432
    %592 = vmatprep.subr.bf16.mxu0 0
    %593 = vmatpush1.bf16.msra.mxu0 %v433
    %594 = vmatprep.subr.bf16.mxu0 0
    %595 = vmatpush1.bf16.msra.mxu0 %v434
    %596 = vmatprep.subr.bf16.mxu0 0
    %597 = vmatpush1.bf16.msra.mxu0 %v435
    %598 = vmatprep.mubr.bf16.mxu0 %v92
    %599 = vmatmul.mubr.bf16.gmra.mrb[0].mxu0 %v91
    %v600 = vpop.f32.mrb[0].mxu0
    %v601 = vadd.f32 %v560, %v600
    %v602 = vpop.f32.mrb[0].mxu0
    %v603 = vpop.f32.mrb[0].mxu0
    %v604 = vadd.f32 %v563, %v603
    %v605 = vpop.f32.mrb[0].mxu0
    %606 = vdwg.mxu0
    %607 = vst [vmem:[#allocation9] sm:$0xff] %v601
    %608 = vst [vmem:[#allocation9 + $0x8] sm:$0xff] %v604
    %v609 = vld [vmem:[%s3] sm:$0x1]
    %v610 = vld [vmem:[%s3 + $0x1] sm:$0x1]
    %v611 = vlaneseq
    %v612 = vshrl.u32 %v611, 7
    %v613 = vlaneseq
    %v614 = vshrl.u32 %v613, 7
    %v615 = vsub.s32 0, %v614
    %v616 = vrot.slane %v609, %v615
    %v617 = vlaneseq
    %v618 = vshrl.u32 %v617, 7
    %v619 = vsub.s32 0, %v618
    %v620 = vrot.slane %v610, %v619
    %vm621 = vcmp.lt.s32.totalorder %v612, %v616
    %vm622 = vcmp.lt.s32.totalorder %v612, %v620
    %v623 = vsel %vm621, 1, 0
    %v624 = vsel %vm622, 1, 0
    %v625 = vcvt.s32.f32 %v623
    %v626 = vcvt.s32.f32 %v624
    %628 = vset.pattern.permute.xlu0 0
    %629 = vperm.xlu0 %628, %v625
    %v630 = vpop.permute.xlu0 %629
    %633 = vset.pattern.permute.xlu0 0
    %634 = vperm.xlu0 %633, %v626
    %v635 = vpop.permute.xlu0 %634
    %v637 = vmul.f32 %v601, %v630
    %v638 = vmul.f32 %v604, %v635
    %v639 = vrot.slane %v637, 4
    %v640 = vadd.f32 %v637, %v639
    %v641 = vrot.slane %v640, 2
    %v642 = vadd.f32 %v640, %v641
    %v643 = vrot.slane %v642, 1
    %v644 = vadd.f32 %v642, %v643
    %v645 = vrot.slane %v638, 4
    %v646 = vadd.f32 %v638, %v645
    %v647 = vrot.slane %v646, 2
    %v648 = vadd.f32 %v646, %v647
    %v649 = vrot.slane %v648, 1
    %v650 = vadd.f32 %v648, %v649
    %v651 = vmul.f32 %v644, %v644
    %v652 = vmul.f32 %v650, %v650
    %vm655 = vcmask 1041409
    %v656 = vsel %vm655, %v652, %v651
    %vm658 = vcmask 1041408
    %v659 = vsel %vm658, %v656, 0.0
    %660 = vadd.xlane.f32.xlu0 %v659
    %v661 = vpop.xlane.xlu0 %660
    %v662 = vrsqrt.pop %v661
    %v663 = vmul.f32 %v661, %v662
    %vm664 = vcmp.eq.f32.partialorder %v661, inf
    %v665 = vsel %vm664, %v661, %v663
    %vm666 = vcmp.eq.f32.partialorder %v661, 0.0
    %v667 = vand.u32 %v661, 2147483648
    %v668 = vsel %vm666, %v667, %v665
    %v669 = vadd.f32 %v668, 1e-08
    %v671 = vrot.slane %v669, 1
    %v674 = vrcp.pop %v669
    %v675 = vmul.f32 %v644, %v674
    %v676 = vrcp.pop %v671
    %v677 = vmul.f32 %v650, %v676
    %v680 = vrot.slane %v677, 7
    %v681 = vsel %vm655, %v680, %v675
    %683 = vst [vmem:[#allocation10] sm:$0x3] %v681
    // Predicated region
    $region32: #{tpu_custom_call.1} parent=1 // pred_check
      _
    $region33: #{tpu_custom_call.1} parent=1 // pred_check_branch
      %685 = sbr.rel (0) target = $region35
    $region34: #{tpu_custom_call.1} parent=1 // pred_region
      %s687 = ssub.s32 256, 256
      %688 = vsyncadd [#allocation8], %s687
      %s689 = sshll.u32 [#allocation9], 4
      %s690 = int_to_ptr.vmem [resolvable:$true] %s689
      %695 = dma.vmem_to_hbm [thread:$0]  %s690, 256, %s5, [#allocation8], 128, 128, 8
    $region35: #{tpu_custom_call.1} parent=1 // pred_fallthru
      _
    // Predicated region
    $region36: #{tpu_custom_call.1} parent=1 // pred_check
      _
    $region37: #{tpu_custom_call.1} parent=1 // pred_check_branch
      %697 = sbr.rel (0) target = $region39
    $region38: #{tpu_custom_call.1} parent=1 // pred_region
      %s699 = ssub.s32 32, 32
      %700 = vsyncadd [#allocation11], %s699
      %s702 = sshll.u32 [#allocation10], 4
      %s703 = int_to_ptr.vmem [resolvable:$true] %s702
      %705 = dma.vmem_to_hbm [thread:$0]  %s703, 32, %s6, [#allocation11]
    $region39: #{tpu_custom_call.1} parent=1 // pred_fallthru
      _
    // Predicated region
    $region40: #{tpu_custom_call.1} parent=1 // pred_check
      _
    $region41: #{tpu_custom_call.1} parent=1 // pred_check_branch
      %707 = sbr.rel (0) target = $region43
    $region42: #{tpu_custom_call.1} parent=1 // pred_region
      %708 = dma.done [#allocation8], 256
    $region43: #{tpu_custom_call.1} parent=1 // pred_fallthru
      _
    // Predicated region
    $region44: #{tpu_custom_call.1} parent=1 // pred_check
      _
    $region45: #{tpu_custom_call.1} parent=1 // pred_check_branch
      %710 = sbr.rel (0) target = $region47
    $region46: #{tpu_custom_call.1} parent=1 // pred_region
      %711 = dma.done [#allocation11], 32
    $region47: #{tpu_custom_call.1} parent=1 // pred_fallthru
      _
    %712 = vsyncpa [#allocation7], 1
    %713 = vsyncpa [#allocation8], 1
    %714 = vsyncpa [#allocation11], 1
  %715 = vsyncmov [#allocation3]
  %s716 = vpop.sfrf %715
  %p717 = scmp.eq.s32.totalorder %s716, 0
  %p718 = pneg %p717
  %720 = shalt.err (%p718)

</llo_original>
